<compile_context>
chip_gen: v7x
topology: tpu7x:2x2x1
jax: 0.10.0
libtpu: 0.0.40
codegen_flags: <defaults>
</compile_context>

<pallas_src>
import functools

import jax
import jax.numpy as jnp
from jax import lax
from jax.experimental import pallas as pl
from jax.experimental.pallas import tpu as pltpu


def _largest_divisor_leq(n, cap):
    for d in range(min(n, cap), 0, -1):
        if n % d == 0:
            return d
    return 1


def _tap_offsets(ksize):
    pad = ksize // 2
    return [(di - pad, dj - pad) for di in range(ksize) for dj in range(ksize)]


def _border_masks(H, W, ksize):
    """(ksize*ksize, H*W) f32 validity masks (1 = neighbour inside the image)."""
    HW = H * W
    pix = jnp.arange(HW, dtype=jnp.int32)
    row = pix // W
    col = pix - row * W
    masks = []
    for oy, ox in _tap_offsets(ksize):
        valid = jnp.ones((HW,), dtype=bool)
        if oy < 0:
            valid = jnp.logical_and(valid, row >= -oy)
        if oy > 0:
            valid = jnp.logical_and(valid, row < H - oy)
        if ox < 0:
            valid = jnp.logical_and(valid, col >= -ox)
        if ox > 0:
            valid = jnp.logical_and(valid, col < W - ox)
        masks.append(valid.astype(jnp.float32))
    return jnp.stack(masks, axis=0)


# --------------------------- fused kernel --------------------------------------
def _fused_center_attn_kernel(mask_ref, x_ref, wqkv_ref, bqkv_ref, wpt_ref, bp_ref,
                              o_ref, *, C, num_heads, H, W, ksize, block_b):
    hc = C // num_heads
    HW = H * W
    n_tap = ksize * ksize
    # static lane-rotation amount per 3x3 tap (same enumeration order as mask rows)
    shifts = [(-(oy * W + ox)) % HW for oy, ox in _tap_offsets(ksize)]

    @pl.loop(0, block_b)                      # one batch image per iteration
    def _per_batch(b):
        # ---- fused Q|K|V projection: bf16 MXU matmul, f32 accumulate, lane-dense ----
        x = x_ref[b].astype(jnp.bfloat16)                      # (HW, C)
        qkv = lax.dot_general(wqkv_ref[...], x,                # (3C,C) x (HW,C) -> (3C,HW)
                              (((1,), (1,)), ((), ())),
                              preferred_element_type=jnp.float32)
        qkv = qkv + bqkv_ref[...]                              # channels-first (3C, HW)

        y_cf = jnp.zeros((C, HW), jnp.float32)                 # lane-dense out-proj acc
        for h in range(num_heads):
            lo = h * hc
            q_h = qkv[lo:lo + hc]                              # pre-scaled by 1/sqrt(hc)
            k_h = qkv[C + lo:C + lo + hc]
            v_h = qkv[2 * C + lo:2 * C + lo + hc]

            # ---- pass 1: 9-tap scores (static XLU rolls + border masks) ----
            rows = []
            for t in range(n_tap):
                s = shifts[t]
                kk = pltpu.roll(k_h, s, axis=1) if s else k_h
                raw = jnp.sum(q_h * kk, axis=0, keepdims=True)          # (1, HW)
                rows.append(raw * mask_ref[t:t + 1, :])                 # padded key -> score 0

            m = rows[0]
            for t in range(1, n_tap):
                m = jnp.maximum(m, rows[t])
            ps = [jnp.exp(r - m) for r in rows]                # padded keys keep softmax mass
            l = ps[0]
            for t in range(1, n_tap):
                l = l + ps[t]
            inv_l = pl.reciprocal(l, approx=True)              # EUP, off the VALU slot

            # ---- pass 2: weighted sum of the rolled V taps ----
            acc = jnp.zeros((hc, HW), jnp.float32)
            for t in range(n_tap):
                s = shifts[t]
                vv = pltpu.roll(v_h, s, axis=1) if s else v_h
                w_t = ps[t] * mask_ref[t:t + 1, :]             # padded values contribute 0
                acc = acc + w_t * vv
            acc = acc * inv_l                                   # (hc, HW)

            # ---- per-head output-projection contribution (standard-dims matmul) ----
            y_cf = y_cf + jnp.dot(wpt_ref[h], acc,             # (C,hc) @ (hc,HW) -> (C,HW)
                                  preferred_element_type=jnp.float32)

        # single small transpose back to the module's tokens-major layout
        o_ref[b] = y_cf.T + bp_ref[...]                         # (HW, C)


# --------------------------- full forward --------------------------------------
def center_attention_forward(x, H, W, params, *, num_heads, ksize=3):
    """Matches CenterAttention.forward (stride=1, padding=True, eval mode:
    attn_drop = proj_drop = 0.0 => identity)."""
    B, N, C = x.shape
    assert N == H * W
    assert C % num_heads == 0
    hc = C // num_heads
    HW = H * W
    n_tap = ksize * ksize
    scale = float(hc) ** -0.5

    # Fused q|k|v weights, pre-transposed to (3C, C); 1/sqrt(hc) folded into q
    # (identical math to q_proj(x) * scale).  bf16 weights feed the MXU directly.
    w_qkv_t = jnp.concatenate([params["wq"].T * scale, params["wkv"].T], axis=0)
    w_qkv_t = w_qkv_t.astype(jnp.bfloat16)
    b_qkv = jnp.concatenate([params["bq"] * scale, params["bkv"]], axis=0).reshape(3 * C, 1)

    # Output-projection weight, transposed and pre-split per head (num_heads, C, hc)
    # so the kernel indexes head h on the leading axis (no lane-sliced ref reads).
    wpt_heads = params["wp"].T.reshape(C, num_heads, hc).transpose(1, 0, 2)
    bp = params["bp"].reshape(1, C)

    masks = _border_masks(H, W, ksize)                          # (n_tap, HW) f32

    # Batch block: as many images per grid step as a modest VMEM budget allows,
    # but keep >= 2 grid steps so both v7x TensorCores get work.
    io_bytes_per_batch = 2 * HW * C * 4                         # x tile + out tile (f32)
    cap = max(1, (8 * 1024 * 1024) // (4 * io_bytes_per_batch))
    cap = min(cap, 8)
    if B >= 2:
        cap = min(cap, B // 2)
    block_b = _largest_divisor_leq(B, max(cap, 1))
    grid = (B // block_b,)

    vmem_bytes = (4 * block_b * HW * C * 4                      # double-buffered x + out
                  + 3 * C * C * 2 + C * C * 4                   # weights
                  + n_tap * HW * 4 + 4 * C * 4)                 # masks + biases
    vmem_limit = int(min(48 * 1024 * 1024, max(32 * 1024 * 1024, 4 * vmem_bytes)))

    kernel = functools.partial(_fused_center_attn_kernel, C=C, num_heads=num_heads,
                               H=H, W=W, ksize=ksize, block_b=block_b)
    grid_spec = pltpu.PrefetchScalarGridSpec(
        num_scalar_prefetch=0,
        grid=grid,
        in_specs=[
            pl.BlockSpec((n_tap, HW), lambda b: (0, 0)),               # border masks
            pl.BlockSpec((block_b, HW, C), lambda b: (b, 0, 0)),       # x
            pl.BlockSpec((3 * C, C), lambda b: (0, 0)),                # W_qkv^T (bf16)
            pl.BlockSpec((3 * C, 1), lambda b: (0, 0)),                # b_qkv
            pl.BlockSpec((num_heads, C, hc), lambda b: (0, 0, 0)),     # W_p^T per head
            pl.BlockSpec((1, C), lambda b: (0, 0)),                    # b_p
        ],
        out_specs=pl.BlockSpec((block_b, HW, C), lambda b: (b, 0, 0)),
    )
    out = pl.pallas_call(
        kernel,
        out_shape=jax.ShapeDtypeStruct((B, HW, C), jnp.float32),
        grid_spec=grid_spec,
        compiler_params=pltpu.CompilerParams(
            dimension_semantics=("parallel",),
            vmem_limit_bytes=vmem_limit),
    )(masks, x, w_qkv_t, b_qkv, wpt_heads, bp)
    return out                                                   # (B, N, C)


# --------------------------- pure-JAX reference ---------------------------------
def reference_forward(x, H, W, params, *, num_heads, ksize=3):
    B, N, C = x.shape
    hc = C // num_heads
    scale = float(hc) ** -0.5
    pad = ksize // 2

    x_flat = x.reshape(B * N, C)
    q = x_flat @ params["wq"] + params["bq"]
    kv = x_flat @ params["wkv"] + params["bkv"]
    k, v = kv[:, :C], kv[:, C:]

    def to_heads(t):
        t = t.reshape(B, H, W, num_heads, hc)
        return jnp.transpose(t, (0, 3, 1, 2, 4)).reshape(B * num_heads, H, W, hc)

    qh, kh, vh = to_heads(q), to_heads(k), to_heads(v)
    padw = ((0, 0), (pad, pad), (pad, pad), (0, 0))
    k_pad, v_pad = jnp.pad(kh, padw), jnp.pad(vh, padw)

    kpat = jnp.stack([k_pad[:, di:di + H, dj:dj + W, :]
                      for di in range(ksize) for dj in range(ksize)], axis=3)
    vpat = jnp.stack([v_pad[:, di:di + H, dj:dj + W, :]
                      for di in range(ksize) for dj in range(ksize)], axis=3)

    scores = jnp.einsum("ghwc,ghwkc->ghwk", qh * scale, kpat)
    attn = jax.nn.softmax(scores, axis=-1)
    out = jnp.einsum("ghwk,ghwkc->ghwc", attn, vpat)

    out = out.reshape(B, num_heads, H, W, hc)
    out = jnp.transpose(out, (0, 2, 3, 1, 4)).reshape(B * H * W, C)
    out = out @ params["wp"] + params["bp"]
    return out.reshape(B, N, C)


# --------------------------- main ------------------------------------------------
if __name__ == "__main__":
    B, C, H, W = 2, 32, 16, 16
    num_heads = 2
    N = H * W

    key = jax.random.PRNGKey(0)
    k1, k2, k3, kx = jax.random.split(key, 4)

    def trunc_normal(k, shape, std=0.02):
        return (std * jax.random.truncated_normal(k, -2.0, 2.0, shape)).astype(jnp.float32)

    params = {
        "wq": trunc_normal(k1, (C, C)),
        "bq": jnp.zeros((C,), jnp.float32),
        "wkv": trunc_normal(k2, (C, 2 * C)),
        "bkv": jnp.zeros((2 * C,), jnp.float32),
        "wp": trunc_normal(k3, (C, C)),
        "bp": jnp.zeros((C,), jnp.float32),
    }

    x = jax.random.normal(kx, (B, N, C), jnp.float32)

    fwd = jax.jit(functools.partial(center_attention_forward, H=H, W=W,
                                    params=params, num_heads=num_heads))
    out = jax.block_until_ready(fwd(x))
    assert out.shape == (B, N, C)

    ref = reference_forward(x, H, W, params, num_heads=num_heads)
    assert jnp.allclose(out, ref, atol=2e-3, rtol=2e-3), "mismatch vs JAX reference"

    print("KERNEL_OK")
</pallas_src>

<mosaic_0001>
module attributes {stable_mosaic.version = 11 : i64} {
  func.func @_fused_center_attn_kernel(%arg0: i32, %arg1: memref<9x256xf32, #tpu.memory_space<vmem>>, %arg2: memref<1x256x32xf32, #tpu.memory_space<vmem>>, %arg3: memref<96x32xbf16, #tpu.memory_space<vmem>>, %arg4: memref<96x1xf32, #tpu.memory_space<vmem>>, %arg5: memref<2x32x16xf32, #tpu.memory_space<vmem>>, %arg6: memref<1x32xf32, #tpu.memory_space<vmem>>, %arg7: memref<1x256x32xf32, #tpu.memory_space<vmem>>) attributes {dimension_semantics = [#tpu.dimension_semantics<parallel>], iteration_bounds = array<i64: 2>, scalar_prefetch = 0 : i64, scratch_operands = 0 : i64, tpu.core_type = #tpu.core_type<tc>, window_params = [{pipeline_mode = #tpu.pipeline_mode<synchronous>, transform_indices = @transform_0, window_bounds = array<i64: 9, 256>}, {transform_indices = @transform_1, window_bounds = array<i64: 1, 256, 32>}, {pipeline_mode = #tpu.pipeline_mode<synchronous>, transform_indices = @transform_2, window_bounds = array<i64: 96, 32>}, {pipeline_mode = #tpu.pipeline_mode<synchronous>, transform_indices = @transform_3, window_bounds = array<i64: 96, 1>}, {pipeline_mode = #tpu.pipeline_mode<synchronous>, transform_indices = @transform_4, window_bounds = array<i64: 2, 32, 16>}, {pipeline_mode = #tpu.pipeline_mode<synchronous>, transform_indices = @transform_5, window_bounds = array<i64: 1, 32>}, {transform_indices = @transform_6, window_bounds = array<i64: 1, 256, 32>}]} {
    %c0_i32 = arith.constant 0 : i32
    %c1_i32 = arith.constant 1 : i32
    %0 = arith.muli %c0_i32, %c1_i32 : i32
    %c0_i32_0 = arith.constant 0 : i32
    %1 = arith.addi %c0_i32_0, %0 : i32
    %2 = arith.index_cast %1 : i32 to index
    %c0 = arith.constant 0 : index
    %c0_1 = arith.constant 0 : index
    %3 = vector.load %arg2[%2, %c0, %c0_1] : memref<1x256x32xf32, #tpu.memory_space<vmem>>, vector<1x256x32xf32>
    %4 = vector.shape_cast %3 : vector<1x256x32xf32> to vector<256x32xf32>
    %5 = arith.truncf %4 : vector<256x32xf32> to vector<256x32xbf16>
    %c0_2 = arith.constant 0 : index
    %c0_3 = arith.constant 0 : index
    %6 = vector.load %arg3[%c0_2, %c0_3] : memref<96x32xbf16, #tpu.memory_space<vmem>>, vector<96x32xbf16>
    %cst = arith.constant dense<0.000000e+00> : vector<96x256xf32>
    %7 = tpu.matmul %6, %5, %cst {dimension_numbers = #tpu.dot_dimension_numbers<[1], [1], [0], [0], [0, 0, 1, 0], [], []>} : vector<96x32xbf16>, vector<256x32xbf16>, vector<96x256xf32> -> vector<96x256xf32>
    %c0_4 = arith.constant 0 : index
    %c0_5 = arith.constant 0 : index
    %8 = vector.load %arg4[%c0_4, %c0_5] : memref<96x1xf32, #tpu.memory_space<vmem>>, vector<96x1xf32>
    %9 = vector.broadcast %8 : vector<96x1xf32> to vector<96x256xf32>
    %10 = arith.addf %7, %9 : vector<96x256xf32>
    %cst_6 = arith.constant 0.000000e+00 : f32
    %11 = vector.broadcast %cst_6 : f32 to vector<32x256xf32>
    %12 = vector.extract_strided_slice %10 {offsets = [0, 0], sizes = [16, 256], strides = [1, 1]} : vector<96x256xf32> to vector<16x256xf32>
    %13 = vector.extract_strided_slice %10 {offsets = [32, 0], sizes = [16, 256], strides = [1, 1]} : vector<96x256xf32> to vector<16x256xf32>
    %14 = vector.extract_strided_slice %10 {offsets = [64, 0], sizes = [16, 256], strides = [1, 1]} : vector<96x256xf32> to vector<16x256xf32>
    %c17_i32 = arith.constant 17 : i32
    %15 = tpu.dynamic_rotate %13 by %c17_i32 dim 1 : vector<16x256xf32>, i32 -> vector<16x256xf32>
    %16 = arith.mulf %12, %15 : vector<16x256xf32>
    %cst_7 = arith.constant dense<0.000000e+00> : vector<256xf32>
    %17 = vector.multi_reduction <add>, %16, %cst_7 [0] : vector<16x256xf32> to vector<256xf32>
    %18 = vector.shape_cast %17 : vector<256xf32> to vector<1x256xf32>
    %c0_8 = arith.constant 0 : index
    %c0_9 = arith.constant 0 : index
    %19 = vector.load %arg1[%c0_8, %c0_9] : memref<9x256xf32, #tpu.memory_space<vmem>>, vector<1x256xf32>
    %20 = arith.mulf %18, %19 : vector<1x256xf32>
    %c16_i32 = arith.constant 16 : i32
    %21 = tpu.dynamic_rotate %13 by %c16_i32 dim 1 : vector<16x256xf32>, i32 -> vector<16x256xf32>
    %22 = arith.mulf %12, %21 : vector<16x256xf32>
    %cst_10 = arith.constant dense<0.000000e+00> : vector<256xf32>
    %23 = vector.multi_reduction <add>, %22, %cst_10 [0] : vector<16x256xf32> to vector<256xf32>
    %24 = vector.shape_cast %23 : vector<256xf32> to vector<1x256xf32>
    %c1 = arith.constant 1 : index
    %c0_11 = arith.constant 0 : index
    %25 = vector.load %arg1[%c1, %c0_11] : memref<9x256xf32, #tpu.memory_space<vmem>>, vector<1x256xf32>
    %26 = arith.mulf %24, %25 : vector<1x256xf32>
    %c15_i32 = arith.constant 15 : i32
    %27 = tpu.dynamic_rotate %13 by %c15_i32 dim 1 : vector<16x256xf32>, i32 -> vector<16x256xf32>
    %28 = arith.mulf %12, %27 : vector<16x256xf32>
    %cst_12 = arith.constant dense<0.000000e+00> : vector<256xf32>
    %29 = vector.multi_reduction <add>, %28, %cst_12 [0] : vector<16x256xf32> to vector<256xf32>
    %30 = vector.shape_cast %29 : vector<256xf32> to vector<1x256xf32>
    %c2 = arith.constant 2 : index
    %c0_13 = arith.constant 0 : index
    %31 = vector.load %arg1[%c2, %c0_13] : memref<9x256xf32, #tpu.memory_space<vmem>>, vector<1x256xf32>
    %32 = arith.mulf %30, %31 : vector<1x256xf32>
    %c1_i32_14 = arith.constant 1 : i32
    %33 = tpu.dynamic_rotate %13 by %c1_i32_14 dim 1 : vector<16x256xf32>, i32 -> vector<16x256xf32>
    %34 = arith.mulf %12, %33 : vector<16x256xf32>
    %cst_15 = arith.constant dense<0.000000e+00> : vector<256xf32>
    %35 = vector.multi_reduction <add>, %34, %cst_15 [0] : vector<16x256xf32> to vector<256xf32>
    %36 = vector.shape_cast %35 : vector<256xf32> to vector<1x256xf32>
    %c3 = arith.constant 3 : index
    %c0_16 = arith.constant 0 : index
    %37 = vector.load %arg1[%c3, %c0_16] : memref<9x256xf32, #tpu.memory_space<vmem>>, vector<1x256xf32>
    %38 = arith.mulf %36, %37 : vector<1x256xf32>
    %39 = arith.mulf %12, %13 : vector<16x256xf32>
    %cst_17 = arith.constant dense<0.000000e+00> : vector<256xf32>
    %40 = vector.multi_reduction <add>, %39, %cst_17 [0] : vector<16x256xf32> to vector<256xf32>
    %41 = vector.shape_cast %40 : vector<256xf32> to vector<1x256xf32>
    %c4 = arith.constant 4 : index
    %c0_18 = arith.constant 0 : index
    %42 = vector.load %arg1[%c4, %c0_18] : memref<9x256xf32, #tpu.memory_space<vmem>>, vector<1x256xf32>
    %43 = arith.mulf %41, %42 : vector<1x256xf32>
    %c255_i32 = arith.constant 255 : i32
    %44 = tpu.dynamic_rotate %13 by %c255_i32 dim 1 : vector<16x256xf32>, i32 -> vector<16x256xf32>
    %45 = arith.mulf %12, %44 : vector<16x256xf32>
    %cst_19 = arith.constant dense<0.000000e+00> : vector<256xf32>
    %46 = vector.multi_reduction <add>, %45, %cst_19 [0] : vector<16x256xf32> to vector<256xf32>
    %47 = vector.shape_cast %46 : vector<256xf32> to vector<1x256xf32>
    %c5 = arith.constant 5 : index
    %c0_20 = arith.constant 0 : index
    %48 = vector.load %arg1[%c5, %c0_20] : memref<9x256xf32, #tpu.memory_space<vmem>>, vector<1x256xf32>
    %49 = arith.mulf %47, %48 : vector<1x256xf32>
    %c241_i32 = arith.constant 241 : i32
    %50 = tpu.dynamic_rotate %13 by %c241_i32 dim 1 : vector<16x256xf32>, i32 -> vector<16x256xf32>
    %51 = arith.mulf %12, %50 : vector<16x256xf32>
    %cst_21 = arith.constant dense<0.000000e+00> : vector<256xf32>
    %52 = vector.multi_reduction <add>, %51, %cst_21 [0] : vector<16x256xf32> to vector<256xf32>
    %53 = vector.shape_cast %52 : vector<256xf32> to vector<1x256xf32>
    %c6 = arith.constant 6 : index
    %c0_22 = arith.constant 0 : index
    %54 = vector.load %arg1[%c6, %c0_22] : memref<9x256xf32, #tpu.memory_space<vmem>>, vector<1x256xf32>
    %55 = arith.mulf %53, %54 : vector<1x256xf32>
    %c240_i32 = arith.constant 240 : i32
    %56 = tpu.dynamic_rotate %13 by %c240_i32 dim 1 : vector<16x256xf32>, i32 -> vector<16x256xf32>
    %57 = arith.mulf %12, %56 : vector<16x256xf32>
    %cst_23 = arith.constant dense<0.000000e+00> : vector<256xf32>
    %58 = vector.multi_reduction <add>, %57, %cst_23 [0] : vector<16x256xf32> to vector<256xf32>
    %59 = vector.shape_cast %58 : vector<256xf32> to vector<1x256xf32>
    %c7 = arith.constant 7 : index
    %c0_24 = arith.constant 0 : index
    %60 = vector.load %arg1[%c7, %c0_24] : memref<9x256xf32, #tpu.memory_space<vmem>>, vector<1x256xf32>
    %61 = arith.mulf %59, %60 : vector<1x256xf32>
    %c239_i32 = arith.constant 239 : i32
    %62 = tpu.dynamic_rotate %13 by %c239_i32 dim 1 : vector<16x256xf32>, i32 -> vector<16x256xf32>
    %63 = arith.mulf %12, %62 : vector<16x256xf32>
    %cst_25 = arith.constant dense<0.000000e+00> : vector<256xf32>
    %64 = vector.multi_reduction <add>, %63, %cst_25 [0] : vector<16x256xf32> to vector<256xf32>
    %65 = vector.shape_cast %64 : vector<256xf32> to vector<1x256xf32>
    %c8 = arith.constant 8 : index
    %c0_26 = arith.constant 0 : index
    %66 = vector.load %arg1[%c8, %c0_26] : memref<9x256xf32, #tpu.memory_space<vmem>>, vector<1x256xf32>
    %67 = arith.mulf %65, %66 : vector<1x256xf32>
    %68 = arith.maximumf %20, %26 : vector<1x256xf32>
    %69 = arith.maximumf %68, %32 : vector<1x256xf32>
    %70 = arith.maximumf %69, %38 : vector<1x256xf32>
    %71 = arith.maximumf %70, %43 : vector<1x256xf32>
    %72 = arith.maximumf %71, %49 : vector<1x256xf32>
    %73 = arith.maximumf %72, %55 : vector<1x256xf32>
    %74 = arith.maximumf %73, %61 : vector<1x256xf32>
    %75 = arith.maximumf %74, %67 : vector<1x256xf32>
    %76 = arith.subf %20, %75 : vector<1x256xf32>
    %77 = math.exp %76 : vector<1x256xf32>
    %78 = arith.subf %26, %75 : vector<1x256xf32>
    %79 = math.exp %78 : vector<1x256xf32>
    %80 = arith.subf %32, %75 : vector<1x256xf32>
    %81 = math.exp %80 : vector<1x256xf32>
    %82 = arith.subf %38, %75 : vector<1x256xf32>
    %83 = math.exp %82 : vector<1x256xf32>
    %84 = arith.subf %43, %75 : vector<1x256xf32>
    %85 = math.exp %84 : vector<1x256xf32>
    %86 = arith.subf %49, %75 : vector<1x256xf32>
    %87 = math.exp %86 : vector<1x256xf32>
    %88 = arith.subf %55, %75 : vector<1x256xf32>
    %89 = math.exp %88 : vector<1x256xf32>
    %90 = arith.subf %61, %75 : vector<1x256xf32>
    %91 = math.exp %90 : vector<1x256xf32>
    %92 = arith.subf %67, %75 : vector<1x256xf32>
    %93 = math.exp %92 : vector<1x256xf32>
    %94 = arith.addf %77, %79 : vector<1x256xf32>
    %95 = arith.addf %94, %81 : vector<1x256xf32>
    %96 = arith.addf %95, %83 : vector<1x256xf32>
    %97 = arith.addf %96, %85 : vector<1x256xf32>
    %98 = arith.addf %97, %87 : vector<1x256xf32>
    %99 = arith.addf %98, %89 : vector<1x256xf32>
    %100 = arith.addf %99, %91 : vector<1x256xf32>
    %101 = arith.addf %100, %93 : vector<1x256xf32>
    %102 = tpu.reciprocal %101 {approx = true} : vector<1x256xf32> -> vector<1x256xf32>
    %cst_27 = arith.constant 0.000000e+00 : f32
    %103 = vector.broadcast %cst_27 : f32 to vector<16x256xf32>
    %c17_i32_28 = arith.constant 17 : i32
    %104 = tpu.dynamic_rotate %14 by %c17_i32_28 dim 1 : vector<16x256xf32>, i32 -> vector<16x256xf32>
    %c0_29 = arith.constant 0 : index
    %c0_30 = arith.constant 0 : index
    %105 = vector.load %arg1[%c0_29, %c0_30] : memref<9x256xf32, #tpu.memory_space<vmem>>, vector<1x256xf32>
    %106 = arith.mulf %77, %105 : vector<1x256xf32>
    %107 = vector.broadcast %106 : vector<1x256xf32> to vector<16x256xf32>
    %108 = arith.mulf %107, %104 : vector<16x256xf32>
    %109 = arith.addf %103, %108 : vector<16x256xf32>
    %c16_i32_31 = arith.constant 16 : i32
    %110 = tpu.dynamic_rotate %14 by %c16_i32_31 dim 1 : vector<16x256xf32>, i32 -> vector<16x256xf32>
    %c1_32 = arith.constant 1 : index
    %c0_33 = arith.constant 0 : index
    %111 = vector.load %arg1[%c1_32, %c0_33] : memref<9x256xf32, #tpu.memory_space<vmem>>, vector<1x256xf32>
    %112 = arith.mulf %79, %111 : vector<1x256xf32>
    %113 = vector.broadcast %112 : vector<1x256xf32> to vector<16x256xf32>
    %114 = arith.mulf %113, %110 : vector<16x256xf32>
    %115 = arith.addf %109, %114 : vector<16x256xf32>
    %c15_i32_34 = arith.constant 15 : i32
    %116 = tpu.dynamic_rotate %14 by %c15_i32_34 dim 1 : vector<16x256xf32>, i32 -> vector<16x256xf32>
    %c2_35 = arith.constant 2 : index
    %c0_36 = arith.constant 0 : index
    %117 = vector.load %arg1[%c2_35, %c0_36] : memref<9x256xf32, #tpu.memory_space<vmem>>, vector<1x256xf32>
    %118 = arith.mulf %81, %117 : vector<1x256xf32>
    %119 = vector.broadcast %118 : vector<1x256xf32> to vector<16x256xf32>
    %120 = arith.mulf %119, %116 : vector<16x256xf32>
    %121 = arith.addf %115, %120 : vector<16x256xf32>
    %c1_i32_37 = arith.constant 1 : i32
    %122 = tpu.dynamic_rotate %14 by %c1_i32_37 dim 1 : vector<16x256xf32>, i32 -> vector<16x256xf32>
    %c3_38 = arith.constant 3 : index
    %c0_39 = arith.constant 0 : index
    %123 = vector.load %arg1[%c3_38, %c0_39] : memref<9x256xf32, #tpu.memory_space<vmem>>, vector<1x256xf32>
    %124 = arith.mulf %83, %123 : vector<1x256xf32>
    %125 = vector.broadcast %124 : vector<1x256xf32> to vector<16x256xf32>
    %126 = arith.mulf %125, %122 : vector<16x256xf32>
    %127 = arith.addf %121, %126 : vector<16x256xf32>
    %c4_40 = arith.constant 4 : index
    %c0_41 = arith.constant 0 : index
    %128 = vector.load %arg1[%c4_40, %c0_41] : memref<9x256xf32, #tpu.memory_space<vmem>>, vector<1x256xf32>
    %129 = arith.mulf %85, %128 : vector<1x256xf32>
    %130 = vector.broadcast %129 : vector<1x256xf32> to vector<16x256xf32>
    %131 = arith.mulf %130, %14 : vector<16x256xf32>
    %132 = arith.addf %127, %131 : vector<16x256xf32>
    %c255_i32_42 = arith.constant 255 : i32
    %133 = tpu.dynamic_rotate %14 by %c255_i32_42 dim 1 : vector<16x256xf32>, i32 -> vector<16x256xf32>
    %c5_43 = arith.constant 5 : index
    %c0_44 = arith.constant 0 : index
    %134 = vector.load %arg1[%c5_43, %c0_44] : memref<9x256xf32, #tpu.memory_space<vmem>>, vector<1x256xf32>
    %135 = arith.mulf %87, %134 : vector<1x256xf32>
    %136 = vector.broadcast %135 : vector<1x256xf32> to vector<16x256xf32>
    %137 = arith.mulf %136, %133 : vector<16x256xf32>
    %138 = arith.addf %132, %137 : vector<16x256xf32>
    %c241_i32_45 = arith.constant 241 : i32
    %139 = tpu.dynamic_rotate %14 by %c241_i32_45 dim 1 : vector<16x256xf32>, i32 -> vector<16x256xf32>
    %c6_46 = arith.constant 6 : index
    %c0_47 = arith.constant 0 : index
    %140 = vector.load %arg1[%c6_46, %c0_47] : memref<9x256xf32, #tpu.memory_space<vmem>>, vector<1x256xf32>
    %141 = arith.mulf %89, %140 : vector<1x256xf32>
    %142 = vector.broadcast %141 : vector<1x256xf32> to vector<16x256xf32>
    %143 = arith.mulf %142, %139 : vector<16x256xf32>
    %144 = arith.addf %138, %143 : vector<16x256xf32>
    %c240_i32_48 = arith.constant 240 : i32
    %145 = tpu.dynamic_rotate %14 by %c240_i32_48 dim 1 : vector<16x256xf32>, i32 -> vector<16x256xf32>
    %c7_49 = arith.constant 7 : index
    %c0_50 = arith.constant 0 : index
    %146 = vector.load %arg1[%c7_49, %c0_50] : memref<9x256xf32, #tpu.memory_space<vmem>>, vector<1x256xf32>
    %147 = arith.mulf %91, %146 : vector<1x256xf32>
    %148 = vector.broadcast %147 : vector<1x256xf32> to vector<16x256xf32>
    %149 = arith.mulf %148, %145 : vector<16x256xf32>
    %150 = arith.addf %144, %149 : vector<16x256xf32>
    %c239_i32_51 = arith.constant 239 : i32
    %151 = tpu.dynamic_rotate %14 by %c239_i32_51 dim 1 : vector<16x256xf32>, i32 -> vector<16x256xf32>
    %c8_52 = arith.constant 8 : index
    %c0_53 = arith.constant 0 : index
    %152 = vector.load %arg1[%c8_52, %c0_53] : memref<9x256xf32, #tpu.memory_space<vmem>>, vector<1x256xf32>
    %153 = arith.mulf %93, %152 : vector<1x256xf32>
    %154 = vector.broadcast %153 : vector<1x256xf32> to vector<16x256xf32>
    %155 = arith.mulf %154, %151 : vector<16x256xf32>
    %156 = arith.addf %150, %155 : vector<16x256xf32>
    %157 = vector.broadcast %102 : vector<1x256xf32> to vector<16x256xf32>
    %158 = arith.mulf %156, %157 : vector<16x256xf32>
    %c0_54 = arith.constant 0 : index
    %c0_55 = arith.constant 0 : index
    %c0_56 = arith.constant 0 : index
    %159 = vector.load %arg5[%c0_54, %c0_55, %c0_56] : memref<2x32x16xf32, #tpu.memory_space<vmem>>, vector<1x32x16xf32>
    %160 = vector.shape_cast %159 : vector<1x32x16xf32> to vector<32x16xf32>
    %cst_57 = arith.constant dense<0.000000e+00> : vector<32x256xf32>
    %161 = tpu.matmul %160, %158, %cst_57 {dimension_numbers = #tpu.dot_dimension_numbers<[1], [0], [0], [1], [0, 0, 1, 1], [], []>} : vector<32x16xf32>, vector<16x256xf32>, vector<32x256xf32> -> vector<32x256xf32>
    %162 = arith.addf %11, %161 : vector<32x256xf32>
    %163 = vector.extract_strided_slice %10 {offsets = [16, 0], sizes = [16, 256], strides = [1, 1]} : vector<96x256xf32> to vector<16x256xf32>
    %164 = vector.extract_strided_slice %10 {offsets = [48, 0], sizes = [16, 256], strides = [1, 1]} : vector<96x256xf32> to vector<16x256xf32>
    %165 = vector.extract_strided_slice %10 {offsets = [80, 0], sizes = [16, 256], strides = [1, 1]} : vector<96x256xf32> to vector<16x256xf32>
    %c17_i32_58 = arith.constant 17 : i32
    %166 = tpu.dynamic_rotate %164 by %c17_i32_58 dim 1 : vector<16x256xf32>, i32 -> vector<16x256xf32>
    %167 = arith.mulf %163, %166 : vector<16x256xf32>
    %cst_59 = arith.constant dense<0.000000e+00> : vector<256xf32>
    %168 = vector.multi_reduction <add>, %167, %cst_59 [0] : vector<16x256xf32> to vector<256xf32>
    %169 = vector.shape_cast %168 : vector<256xf32> to vector<1x256xf32>
    %c0_60 = arith.constant 0 : index
    %c0_61 = arith.constant 0 : index
    %170 = vector.load %arg1[%c0_60, %c0_61] : memref<9x256xf32, #tpu.memory_space<vmem>>, vector<1x256xf32>
    %171 = arith.mulf %169, %170 : vector<1x256xf32>
    %c16_i32_62 = arith.constant 16 : i32
    %172 = tpu.dynamic_rotate %164 by %c16_i32_62 dim 1 : vector<16x256xf32>, i32 -> vector<16x256xf32>
    %173 = arith.mulf %163, %172 : vector<16x256xf32>
    %cst_63 = arith.constant dense<0.000000e+00> : vector<256xf32>
    %174 = vector.multi_reduction <add>, %173, %cst_63 [0] : vector<16x256xf32> to vector<256xf32>
    %175 = vector.shape_cast %174 : vector<256xf32> to vector<1x256xf32>
    %c1_64 = arith.constant 1 : index
    %c0_65 = arith.constant 0 : index
    %176 = vector.load %arg1[%c1_64, %c0_65] : memref<9x256xf32, #tpu.memory_space<vmem>>, vector<1x256xf32>
    %177 = arith.mulf %175, %176 : vector<1x256xf32>
    %c15_i32_66 = arith.constant 15 : i32
    %178 = tpu.dynamic_rotate %164 by %c15_i32_66 dim 1 : vector<16x256xf32>, i32 -> vector<16x256xf32>
    %179 = arith.mulf %163, %178 : vector<16x256xf32>
    %cst_67 = arith.constant dense<0.000000e+00> : vector<256xf32>
    %180 = vector.multi_reduction <add>, %179, %cst_67 [0] : vector<16x256xf32> to vector<256xf32>
    %181 = vector.shape_cast %180 : vector<256xf32> to vector<1x256xf32>
    %c2_68 = arith.constant 2 : index
    %c0_69 = arith.constant 0 : index
    %182 = vector.load %arg1[%c2_68, %c0_69] : memref<9x256xf32, #tpu.memory_space<vmem>>, vector<1x256xf32>
    %183 = arith.mulf %181, %182 : vector<1x256xf32>
    %c1_i32_70 = arith.constant 1 : i32
    %184 = tpu.dynamic_rotate %164 by %c1_i32_70 dim 1 : vector<16x256xf32>, i32 -> vector<16x256xf32>
    %185 = arith.mulf %163, %184 : vector<16x256xf32>
    %cst_71 = arith.constant dense<0.000000e+00> : vector<256xf32>
    %186 = vector.multi_reduction <add>, %185, %cst_71 [0] : vector<16x256xf32> to vector<256xf32>
    %187 = vector.shape_cast %186 : vector<256xf32> to vector<1x256xf32>
    %c3_72 = arith.constant 3 : index
    %c0_73 = arith.constant 0 : index
    %188 = vector.load %arg1[%c3_72, %c0_73] : memref<9x256xf32, #tpu.memory_space<vmem>>, vector<1x256xf32>
    %189 = arith.mulf %187, %188 : vector<1x256xf32>
    %190 = arith.mulf %163, %164 : vector<16x256xf32>
    %cst_74 = arith.constant dense<0.000000e+00> : vector<256xf32>
    %191 = vector.multi_reduction <add>, %190, %cst_74 [0] : vector<16x256xf32> to vector<256xf32>
    %192 = vector.shape_cast %191 : vector<256xf32> to vector<1x256xf32>
    %c4_75 = arith.constant 4 : index
    %c0_76 = arith.constant 0 : index
    %193 = vector.load %arg1[%c4_75, %c0_76] : memref<9x256xf32, #tpu.memory_space<vmem>>, vector<1x256xf32>
    %194 = arith.mulf %192, %193 : vector<1x256xf32>
    %c255_i32_77 = arith.constant 255 : i32
    %195 = tpu.dynamic_rotate %164 by %c255_i32_77 dim 1 : vector<16x256xf32>, i32 -> vector<16x256xf32>
    %196 = arith.mulf %163, %195 : vector<16x256xf32>
    %cst_78 = arith.constant dense<0.000000e+00> : vector<256xf32>
    %197 = vector.multi_reduction <add>, %196, %cst_78 [0] : vector<16x256xf32> to vector<256xf32>
    %198 = vector.shape_cast %197 : vector<256xf32> to vector<1x256xf32>
    %c5_79 = arith.constant 5 : index
    %c0_80 = arith.constant 0 : index
    %199 = vector.load %arg1[%c5_79, %c0_80] : memref<9x256xf32, #tpu.memory_space<vmem>>, vector<1x256xf32>
    %200 = arith.mulf %198, %199 : vector<1x256xf32>
    %c241_i32_81 = arith.constant 241 : i32
    %201 = tpu.dynamic_rotate %164 by %c241_i32_81 dim 1 : vector<16x256xf32>, i32 -> vector<16x256xf32>
    %202 = arith.mulf %163, %201 : vector<16x256xf32>
    %cst_82 = arith.constant dense<0.000000e+00> : vector<256xf32>
    %203 = vector.multi_reduction <add>, %202, %cst_82 [0] : vector<16x256xf32> to vector<256xf32>
    %204 = vector.shape_cast %203 : vector<256xf32> to vector<1x256xf32>
    %c6_83 = arith.constant 6 : index
    %c0_84 = arith.constant 0 : index
    %205 = vector.load %arg1[%c6_83, %c0_84] : memref<9x256xf32, #tpu.memory_space<vmem>>, vector<1x256xf32>
    %206 = arith.mulf %204, %205 : vector<1x256xf32>
    %c240_i32_85 = arith.constant 240 : i32
    %207 = tpu.dynamic_rotate %164 by %c240_i32_85 dim 1 : vector<16x256xf32>, i32 -> vector<16x256xf32>
    %208 = arith.mulf %163, %207 : vector<16x256xf32>
    %cst_86 = arith.constant dense<0.000000e+00> : vector<256xf32>
    %209 = vector.multi_reduction <add>, %208, %cst_86 [0] : vector<16x256xf32> to vector<256xf32>
    %210 = vector.shape_cast %209 : vector<256xf32> to vector<1x256xf32>
    %c7_87 = arith.constant 7 : index
    %c0_88 = arith.constant 0 : index
    %211 = vector.load %arg1[%c7_87, %c0_88] : memref<9x256xf32, #tpu.memory_space<vmem>>, vector<1x256xf32>
    %212 = arith.mulf %210, %211 : vector<1x256xf32>
    %c239_i32_89 = arith.constant 239 : i32
    %213 = tpu.dynamic_rotate %164 by %c239_i32_89 dim 1 : vector<16x256xf32>, i32 -> vector<16x256xf32>
    %214 = arith.mulf %163, %213 : vector<16x256xf32>
    %cst_90 = arith.constant dense<0.000000e+00> : vector<256xf32>
    %215 = vector.multi_reduction <add>, %214, %cst_90 [0] : vector<16x256xf32> to vector<256xf32>
    %216 = vector.shape_cast %215 : vector<256xf32> to vector<1x256xf32>
    %c8_91 = arith.constant 8 : index
    %c0_92 = arith.constant 0 : index
    %217 = vector.load %arg1[%c8_91, %c0_92] : memref<9x256xf32, #tpu.memory_space<vmem>>, vector<1x256xf32>
    %218 = arith.mulf %216, %217 : vector<1x256xf32>
    %219 = arith.maximumf %171, %177 : vector<1x256xf32>
    %220 = arith.maximumf %219, %183 : vector<1x256xf32>
    %221 = arith.maximumf %220, %189 : vector<1x256xf32>
    %222 = arith.maximumf %221, %194 : vector<1x256xf32>
    %223 = arith.maximumf %222, %200 : vector<1x256xf32>
    %224 = arith.maximumf %223, %206 : vector<1x256xf32>
    %225 = arith.maximumf %224, %212 : vector<1x256xf32>
    %226 = arith.maximumf %225, %218 : vector<1x256xf32>
    %227 = arith.subf %171, %226 : vector<1x256xf32>
    %228 = math.exp %227 : vector<1x256xf32>
    %229 = arith.subf %177, %226 : vector<1x256xf32>
    %230 = math.exp %229 : vector<1x256xf32>
    %231 = arith.subf %183, %226 : vector<1x256xf32>
    %232 = math.exp %231 : vector<1x256xf32>
    %233 = arith.subf %189, %226 : vector<1x256xf32>
    %234 = math.exp %233 : vector<1x256xf32>
    %235 = arith.subf %194, %226 : vector<1x256xf32>
    %236 = math.exp %235 : vector<1x256xf32>
    %237 = arith.subf %200, %226 : vector<1x256xf32>
    %238 = math.exp %237 : vector<1x256xf32>
    %239 = arith.subf %206, %226 : vector<1x256xf32>
    %240 = math.exp %239 : vector<1x256xf32>
    %241 = arith.subf %212, %226 : vector<1x256xf32>
    %242 = math.exp %241 : vector<1x256xf32>
    %243 = arith.subf %218, %226 : vector<1x256xf32>
    %244 = math.exp %243 : vector<1x256xf32>
    %245 = arith.addf %228, %230 : vector<1x256xf32>
    %246 = arith.addf %245, %232 : vector<1x256xf32>
    %247 = arith.addf %246, %234 : vector<1x256xf32>
    %248 = arith.addf %247, %236 : vector<1x256xf32>
    %249 = arith.addf %248, %238 : vector<1x256xf32>
    %250 = arith.addf %249, %240 : vector<1x256xf32>
    %251 = arith.addf %250, %242 : vector<1x256xf32>
    %252 = arith.addf %251, %244 : vector<1x256xf32>
    %253 = tpu.reciprocal %252 {approx = true} : vector<1x256xf32> -> vector<1x256xf32>
    %cst_93 = arith.constant 0.000000e+00 : f32
    %254 = vector.broadcast %cst_93 : f32 to vector<16x256xf32>
    %c17_i32_94 = arith.constant 17 : i32
    %255 = tpu.dynamic_rotate %165 by %c17_i32_94 dim 1 : vector<16x256xf32>, i32 -> vector<16x256xf32>
    %c0_95 = arith.constant 0 : index
    %c0_96 = arith.constant 0 : index
    %256 = vector.load %arg1[%c0_95, %c0_96] : memref<9x256xf32, #tpu.memory_space<vmem>>, vector<1x256xf32>
    %257 = arith.mulf %228, %256 : vector<1x256xf32>
    %258 = vector.broadcast %257 : vector<1x256xf32> to vector<16x256xf32>
    %259 = arith.mulf %258, %255 : vector<16x256xf32>
    %260 = arith.addf %254, %259 : vector<16x256xf32>
    %c16_i32_97 = arith.constant 16 : i32
    %261 = tpu.dynamic_rotate %165 by %c16_i32_97 dim 1 : vector<16x256xf32>, i32 -> vector<16x256xf32>
    %c1_98 = arith.constant 1 : index
    %c0_99 = arith.constant 0 : index
    %262 = vector.load %arg1[%c1_98, %c0_99] : memref<9x256xf32, #tpu.memory_space<vmem>>, vector<1x256xf32>
    %263 = arith.mulf %230, %262 : vector<1x256xf32>
    %264 = vector.broadcast %263 : vector<1x256xf32> to vector<16x256xf32>
    %265 = arith.mulf %264, %261 : vector<16x256xf32>
    %266 = arith.addf %260, %265 : vector<16x256xf32>
    %c15_i32_100 = arith.constant 15 : i32
    %267 = tpu.dynamic_rotate %165 by %c15_i32_100 dim 1 : vector<16x256xf32>, i32 -> vector<16x256xf32>
    %c2_101 = arith.constant 2 : index
    %c0_102 = arith.constant 0 : index
    %268 = vector.load %arg1[%c2_101, %c0_102] : memref<9x256xf32, #tpu.memory_space<vmem>>, vector<1x256xf32>
    %269 = arith.mulf %232, %268 : vector<1x256xf32>
    %270 = vector.broadcast %269 : vector<1x256xf32> to vector<16x256xf32>
    %271 = arith.mulf %270, %267 : vector<16x256xf32>
    %272 = arith.addf %266, %271 : vector<16x256xf32>
    %c1_i32_103 = arith.constant 1 : i32
    %273 = tpu.dynamic_rotate %165 by %c1_i32_103 dim 1 : vector<16x256xf32>, i32 -> vector<16x256xf32>
    %c3_104 = arith.constant 3 : index
    %c0_105 = arith.constant 0 : index
    %274 = vector.load %arg1[%c3_104, %c0_105] : memref<9x256xf32, #tpu.memory_space<vmem>>, vector<1x256xf32>
    %275 = arith.mulf %234, %274 : vector<1x256xf32>
    %276 = vector.broadcast %275 : vector<1x256xf32> to vector<16x256xf32>
    %277 = arith.mulf %276, %273 : vector<16x256xf32>
    %278 = arith.addf %272, %277 : vector<16x256xf32>
    %c4_106 = arith.constant 4 : index
    %c0_107 = arith.constant 0 : index
    %279 = vector.load %arg1[%c4_106, %c0_107] : memref<9x256xf32, #tpu.memory_space<vmem>>, vector<1x256xf32>
    %280 = arith.mulf %236, %279 : vector<1x256xf32>
    %281 = vector.broadcast %280 : vector<1x256xf32> to vector<16x256xf32>
    %282 = arith.mulf %281, %165 : vector<16x256xf32>
    %283 = arith.addf %278, %282 : vector<16x256xf32>
    %c255_i32_108 = arith.constant 255 : i32
    %284 = tpu.dynamic_rotate %165 by %c255_i32_108 dim 1 : vector<16x256xf32>, i32 -> vector<16x256xf32>
    %c5_109 = arith.constant 5 : index
    %c0_110 = arith.constant 0 : index
    %285 = vector.load %arg1[%c5_109, %c0_110] : memref<9x256xf32, #tpu.memory_space<vmem>>, vector<1x256xf32>
    %286 = arith.mulf %238, %285 : vector<1x256xf32>
    %287 = vector.broadcast %286 : vector<1x256xf32> to vector<16x256xf32>
    %288 = arith.mulf %287, %284 : vector<16x256xf32>
    %289 = arith.addf %283, %288 : vector<16x256xf32>
    %c241_i32_111 = arith.constant 241 : i32
    %290 = tpu.dynamic_rotate %165 by %c241_i32_111 dim 1 : vector<16x256xf32>, i32 -> vector<16x256xf32>
    %c6_112 = arith.constant 6 : index
    %c0_113 = arith.constant 0 : index
    %291 = vector.load %arg1[%c6_112, %c0_113] : memref<9x256xf32, #tpu.memory_space<vmem>>, vector<1x256xf32>
    %292 = arith.mulf %240, %291 : vector<1x256xf32>
    %293 = vector.broadcast %292 : vector<1x256xf32> to vector<16x256xf32>
    %294 = arith.mulf %293, %290 : vector<16x256xf32>
    %295 = arith.addf %289, %294 : vector<16x256xf32>
    %c240_i32_114 = arith.constant 240 : i32
    %296 = tpu.dynamic_rotate %165 by %c240_i32_114 dim 1 : vector<16x256xf32>, i32 -> vector<16x256xf32>
    %c7_115 = arith.constant 7 : index
    %c0_116 = arith.constant 0 : index
    %297 = vector.load %arg1[%c7_115, %c0_116] : memref<9x256xf32, #tpu.memory_space<vmem>>, vector<1x256xf32>
    %298 = arith.mulf %242, %297 : vector<1x256xf32>
    %299 = vector.broadcast %298 : vector<1x256xf32> to vector<16x256xf32>
    %300 = arith.mulf %299, %296 : vector<16x256xf32>
    %301 = arith.addf %295, %300 : vector<16x256xf32>
    %c239_i32_117 = arith.constant 239 : i32
    %302 = tpu.dynamic_rotate %165 by %c239_i32_117 dim 1 : vector<16x256xf32>, i32 -> vector<16x256xf32>
    %c8_118 = arith.constant 8 : index
    %c0_119 = arith.constant 0 : index
    %303 = vector.load %arg1[%c8_118, %c0_119] : memref<9x256xf32, #tpu.memory_space<vmem>>, vector<1x256xf32>
    %304 = arith.mulf %244, %303 : vector<1x256xf32>
    %305 = vector.broadcast %304 : vector<1x256xf32> to vector<16x256xf32>
    %306 = arith.mulf %305, %302 : vector<16x256xf32>
    %307 = arith.addf %301, %306 : vector<16x256xf32>
    %308 = vector.broadcast %253 : vector<1x256xf32> to vector<16x256xf32>
    %309 = arith.mulf %307, %308 : vector<16x256xf32>
    %c1_120 = arith.constant 1 : index
    %c0_121 = arith.constant 0 : index
    %c0_122 = arith.constant 0 : index
    %310 = vector.load %arg5[%c1_120, %c0_121, %c0_122] : memref<2x32x16xf32, #tpu.memory_space<vmem>>, vector<1x32x16xf32>
    %311 = vector.shape_cast %310 : vector<1x32x16xf32> to vector<32x16xf32>
    %cst_123 = arith.constant dense<0.000000e+00> : vector<32x256xf32>
    %312 = tpu.matmul %311, %309, %cst_123 {dimension_numbers = #tpu.dot_dimension_numbers<[1], [0], [0], [1], [0, 0, 1, 1], [], []>} : vector<32x16xf32>, vector<16x256xf32>, vector<32x256xf32> -> vector<32x256xf32>
    %313 = arith.addf %162, %312 : vector<32x256xf32>
    %314 = tpu.transpose %313, [1, 0] : vector<32x256xf32> -> vector<256x32xf32>
    %c0_124 = arith.constant 0 : index
    %c0_125 = arith.constant 0 : index
    %315 = vector.load %arg6[%c0_124, %c0_125] : memref<1x32xf32, #tpu.memory_space<vmem>>, vector<1x32xf32>
    %316 = vector.broadcast %315 : vector<1x32xf32> to vector<256x32xf32>
    %317 = arith.addf %314, %316 : vector<256x32xf32>
    %318 = arith.index_cast %1 : i32 to index
    %c0_126 = arith.constant 0 : index
    %c0_127 = arith.constant 0 : index
    %319 = vector.load %arg7[%318, %c0_126, %c0_127] : memref<1x256x32xf32, #tpu.memory_space<vmem>>, vector<1x256x32xf32>
    %320 = vector.shape_cast %319 : vector<1x256x32xf32> to vector<256x32xf32>
    %321 = vector.shape_cast %317 : vector<256x32xf32> to vector<1x256x32xf32>
    tpu.vector_store %arg7[%318, %c0_126, %c0_127], %321 {strides = array<i32>} : memref<1x256x32xf32, #tpu.memory_space<vmem>>, vector<1x256x32xf32>,
    %c1_i32_128 = arith.constant 1 : i32
    return
  }
  func.func @transform_0(%arg0: i32) -> (i32, i32) {
    %c0_i32 = arith.constant 0 : i32
    %c0_i32_0 = arith.constant 0 : i32
    %c0_i32_1 = arith.constant 0 : i32
    return %c0_i32, %c0_i32_0 : i32, i32
  }
  func.func @transform_1(%arg0: i32) -> (i32, i32, i32) {
    %c0_i32 = arith.constant 0 : i32
    %c0_i32_0 = arith.constant 0 : i32
    %c0_i32_1 = arith.constant 0 : i32
    return %arg0, %c0_i32, %c0_i32_0 : i32, i32, i32
  }
  func.func @transform_2(%arg0: i32) -> (i32, i32) {
    %c0_i32 = arith.constant 0 : i32
    %c0_i32_0 = arith.constant 0 : i32
    %c0_i32_1 = arith.constant 0 : i32
    return %c0_i32, %c0_i32_0 : i32, i32
  }
  func.func @transform_3(%arg0: i32) -> (i32, i32) {
    %c0_i32 = arith.constant 0 : i32
    %c0_i32_0 = arith.constant 0 : i32
    %c0_i32_1 = arith.constant 0 : i32
    return %c0_i32, %c0_i32_0 : i32, i32
  }
  func.func @transform_4(%arg0: i32) -> (i32, i32, i32) {
    %c0_i32 = arith.constant 0 : i32
    %c0_i32_0 = arith.constant 0 : i32
    %c0_i32_1 = arith.constant 0 : i32
    %c0_i32_2 = arith.constant 0 : i32
    return %c0_i32, %c0_i32_0, %c0_i32_1 : i32, i32, i32
  }
  func.func @transform_5(%arg0: i32) -> (i32, i32) {
    %c0_i32 = arith.constant 0 : i32
    %c0_i32_0 = arith.constant 0 : i32
    %c0_i32_1 = arith.constant 0 : i32
    return %c0_i32, %c0_i32_0 : i32, i32
  }
  func.func @transform_6(%arg0: i32) -> (i32, i32, i32) {
    %c0_i32 = arith.constant 0 : i32
    %c0_i32_0 = arith.constant 0 : i32
    %c0_i32_1 = arith.constant 0 : i32
    return %arg0, %c0_i32, %c0_i32_0 : i32, i32, i32
  }
}

</mosaic_0001>

<llo_original>
// kernel: center_attention_forward.1
$region0: #{center_attention_forward.1}
  #allocation0 [shape = 'u32[]', space=smem, size = 0x4, offset = 0x4, fixed_abs, tag = 'smem constant byte address 0x4 - core index']
  #allocation1 [shape = 'u32[144,128]{1,0:T(1,128)}', space=vmem, size = 0x12000, scoped, tag = 'internal scratch']
  %s0 = inlined_call_operand.vmem [shape: f32[9,256], index: 0, kind: input, shape index: {}]
  %s1 = inlined_call_operand.vmem [shape: f32[2,256,32], index: 1, kind: input, shape index: {}]
  %s2 = inlined_call_operand.vmem [shape: bf16[96,32], index: 2, kind: input, shape index: {}]
  %s3 = inlined_call_operand.vmem [shape: f32[96,1], index: 3, kind: input, shape index: {}]
  %s4 = inlined_call_operand.vmem [shape: f32[2,32,16], index: 4, kind: input, shape index: {}]
  %s5 = inlined_call_operand.vmem [shape: f32[1,32], index: 5, kind: input, shape index: {}]
  %s6 = inlined_call_operand.vmem [shape: f32[2,256,32], index: 6, kind: output, shape index: {}]
  %s7 = sld [smem:[#allocation0]]
  $region57: #{center_attention_forward.1} parent=0
    _
  %s9 = ssub.s32 1, %s7
  %s10 = scalar_select 0, %s9, %s7
  loop: start=0, step=1, limit=4
  $region2: #{center_attention_forward.1} parent=0 // loop_pre_header
    _
  $region3: #{center_attention_forward.1} parent=0 // loop_header
    %s12 = sphi 0, %s16
    %p13 = scmp.ge.s32.totalorder %s12, 4
    %s20 = sphi 0, %s20
    %s22 = sphi 0, %s20
    %s23 = sphi 0, %s22
    %s37 = sphi 0, %s23
    %s43 = sphi 0, %s45
    %s46 = sphi 0, %s43
    %s47 = sphi 0, %s46
    %s63 = sphi 0, %s47
    %s67 = sphi 0, %s67
    %s69 = sphi 0, %s67
    %s70 = sphi 0, %s69
    %s84 = sphi 0, %s70
    %s88 = sphi 0, %s88
    %s90 = sphi 0, %s88
    %s91 = sphi 0, %s90
    %s105 = sphi 0, %s91
    %s109 = sphi 0, %s109
    %s111 = sphi 0, %s109
    %s112 = sphi 0, %s111
    %s126 = sphi 0, %s112
    %s130 = sphi 0, %s130
    %s132 = sphi 0, %s130
    %s133 = sphi 0, %s132
    %s147 = sphi 0, %s133
    %s153 = sphi 0, %s155
    %s156 = sphi 0, %s153
    %s157 = sphi 0, %s156
    %s173 = sphi 0, %s157
  $region4: #{center_attention_forward.1} parent=0 // loop_header_branch
    %15 = sbr.rel (%p13) target = $region8
  $region5: #{center_attention_forward.1} parent=0 // loop_body
    %s17 = ssub.s32 %s12, 1
    %s18 = ssub.s32 %s12, 2
    %s19 = sadd.s32 %s12, 1
    %s21 = sadd.s32 %s20, 1
    %p24 = scmp.eq.s32.totalorder %s12, 1
    %p25 = scmp.ne.s32.totalorder %s20, %s22
    %p26 = scmp.eq.s32.totalorder %s12, 0
    %p27 = por %p25, %p26
    %p28 = scmp.ne.s32.totalorder %s20, %s22
    %p29 = scmp.eq.s32.totalorder %s17, 1
    %p30 = por %p28, %p29
    %p31 = scmp.ne.s32.totalorder %s22, %s23
    %p32 = scmp.eq.s32.totalorder %s17, 0
    %p33 = por %p31, %p32
    %p34 = scmp.ne.s32.totalorder %s22, %s23
    %p35 = scmp.eq.s32.totalorder %s18, 1
    %p36 = por %p34, %p35
    %p38 = scmp.ne.s32.totalorder %s23, %s37
    %p39 = scmp.eq.s32.totalorder %s18, 0
    %p40 = por %p38, %p39
    %s41 = ssub.s32 %s12, %s19
    %p42 = scmp.eq.s32.totalorder %s41, 0
    %s44 = sadd.s32 %s43, 1
    %s45 = scalar_select %p42, %s43, %s44
    %p48 = pneg %p42
    %p49 = scmp.eq.s32.totalorder %s12, 1
    %p50 = por %p48, %p49
    %p51 = scmp.ne.s32.totalorder %s43, %s46
    %p52 = scmp.eq.s32.totalorder %s12, 0
    %p53 = por %p51, %p52
    %p54 = scmp.ne.s32.totalorder %s43, %s46
    %p55 = scmp.eq.s32.totalorder %s17, 1
    %p56 = por %p54, %p55
    %p57 = scmp.ne.s32.totalorder %s46, %s47
    %p58 = scmp.eq.s32.totalorder %s17, 0
    %p59 = por %p57, %p58
    %p60 = scmp.ne.s32.totalorder %s46, %s47
    %p61 = scmp.eq.s32.totalorder %s18, 1
    %p62 = por %p60, %p61
    %p64 = scmp.ne.s32.totalorder %s47, %s63
    %p65 = scmp.eq.s32.totalorder %s18, 0
    %p66 = por %p64, %p65
    %s68 = sadd.s32 %s67, 1
    %p71 = scmp.eq.s32.totalorder %s12, 1
    %p72 = scmp.ne.s32.totalorder %s67, %s69
    %p73 = scmp.eq.s32.totalorder %s12, 0
    %p74 = por %p72, %p73
    %p75 = scmp.ne.s32.totalorder %s67, %s69
    %p76 = scmp.eq.s32.totalorder %s17, 1
    %p77 = por %p75, %p76
    %p78 = scmp.ne.s32.totalorder %s69, %s70
    %p79 = scmp.eq.s32.totalorder %s17, 0
    %p80 = por %p78, %p79
    %p81 = scmp.ne.s32.totalorder %s69, %s70
    %p82 = scmp.eq.s32.totalorder %s18, 1
    %p83 = por %p81, %p82
    %p85 = scmp.ne.s32.totalorder %s70, %s84
    %p86 = scmp.eq.s32.totalorder %s18, 0
    %p87 = por %p85, %p86
    %s89 = sadd.s32 %s88, 1
    %p92 = scmp.eq.s32.totalorder %s12, 1
    %p93 = scmp.ne.s32.totalorder %s88, %s90
    %p94 = scmp.eq.s32.totalorder %s12, 0
    %p95 = por %p93, %p94
    %p96 = scmp.ne.s32.totalorder %s88, %s90
    %p97 = scmp.eq.s32.totalorder %s17, 1
    %p98 = por %p96, %p97
    %p99 = scmp.ne.s32.totalorder %s90, %s91
    %p100 = scmp.eq.s32.totalorder %s17, 0
    %p101 = por %p99, %p100
    %p102 = scmp.ne.s32.totalorder %s90, %s91
    %p103 = scmp.eq.s32.totalorder %s18, 1
    %p104 = por %p102, %p103
    %p106 = scmp.ne.s32.totalorder %s91, %s105
    %p107 = scmp.eq.s32.totalorder %s18, 0
    %p108 = por %p106, %p107
    %s110 = sadd.s32 %s109, 1
    %p113 = scmp.eq.s32.totalorder %s12, 1
    %p114 = scmp.ne.s32.totalorder %s109, %s111
    %p115 = scmp.eq.s32.totalorder %s12, 0
    %p116 = por %p114, %p115
    %p117 = scmp.ne.s32.totalorder %s109, %s111
    %p118 = scmp.eq.s32.totalorder %s17, 1
    %p119 = por %p117, %p118
    %p120 = scmp.ne.s32.totalorder %s111, %s112
    %p121 = scmp.eq.s32.totalorder %s17, 0
    %p122 = por %p120, %p121
    %p123 = scmp.ne.s32.totalorder %s111, %s112
    %p124 = scmp.eq.s32.totalorder %s18, 1
    %p125 = por %p123, %p124
    %p127 = scmp.ne.s32.totalorder %s112, %s126
    %p128 = scmp.eq.s32.totalorder %s18, 0
    %p129 = por %p127, %p128
    %s131 = sadd.s32 %s130, 1
    %p134 = scmp.eq.s32.totalorder %s12, 1
    %p135 = scmp.ne.s32.totalorder %s130, %s132
    %p136 = scmp.eq.s32.totalorder %s12, 0
    %p137 = por %p135, %p136
    %p138 = scmp.ne.s32.totalorder %s130, %s132
    %p139 = scmp.eq.s32.totalorder %s17, 1
    %p140 = por %p138, %p139
    %p141 = scmp.ne.s32.totalorder %s132, %s133
    %p142 = scmp.eq.s32.totalorder %s17, 0
    %p143 = por %p141, %p142
    %p144 = scmp.ne.s32.totalorder %s132, %s133
    %p145 = scmp.eq.s32.totalorder %s18, 1
    %p146 = por %p144, %p145
    %p148 = scmp.ne.s32.totalorder %s133, %s147
    %p149 = scmp.eq.s32.totalorder %s18, 0
    %p150 = por %p148, %p149
    %s151 = ssub.s32 %s12, %s19
    %p152 = scmp.eq.s32.totalorder %s151, 0
    %s154 = sadd.s32 %s153, 1
    %s155 = scalar_select %p152, %s153, %s154
    %p158 = pneg %p152
    %p159 = scmp.eq.s32.totalorder %s12, 1
    %p160 = por %p158, %p159
    %p161 = scmp.ne.s32.totalorder %s153, %s156
    %p162 = scmp.eq.s32.totalorder %s12, 0
    %p163 = por %p161, %p162
    %p164 = scmp.ne.s32.totalorder %s153, %s156
    %p165 = scmp.eq.s32.totalorder %s17, 1
    %p166 = por %p164, %p165
    %p167 = scmp.ne.s32.totalorder %s156, %s157
    %p168 = scmp.eq.s32.totalorder %s17, 0
    %p169 = por %p167, %p168
    %p170 = scmp.ne.s32.totalorder %s156, %s157
    %p171 = scmp.eq.s32.totalorder %s18, 1
    %p172 = por %p170, %p171
    %p174 = scmp.ne.s32.totalorder %s157, %s173
    %p175 = scmp.eq.s32.totalorder %s18, 0
    %p176 = por %p174, %p175
    %p177 = scmp.le.s32.totalorder 1, %s12
    %p178 = scmp.lt.s32.totalorder %s12, 3
    %p179 = pnand %p177, %p178
    %p180 = pneg %p179
    // Predicated region
    $region9: #{center_attention_forward.1} parent=5 // pred_check
      _
    $region10: #{center_attention_forward.1} parent=5 // pred_check_branch
      %182 = sbr.rel (%p179) target = $region12
    $region11: #{center_attention_forward.1} parent=5 // pred_region
      %s183 = ssub.s32 %s12, 1
      // Predicated region
      $region13: #{center_attention_forward.1} parent=11 // pred_check
        %p184 = pneg %p33
      $region14: #{center_attention_forward.1} parent=11 // pred_check_branch
        %186 = sbr.rel (%p184) target = $region16
      $region15: #{center_attention_forward.1} parent=11 // pred_region
        _
      $region16: #{center_attention_forward.1} parent=11 // pred_fallthru
        _
      // Predicated region
      $region17: #{center_attention_forward.1} parent=11 // pred_check
        %p187 = pneg %p80
      $region18: #{center_attention_forward.1} parent=11 // pred_check_branch
        %189 = sbr.rel (%p187) target = $region20
      $region19: #{center_attention_forward.1} parent=11 // pred_region
        _
      $region20: #{center_attention_forward.1} parent=11 // pred_fallthru
        _
      // Predicated region
      $region21: #{center_attention_forward.1} parent=11 // pred_check
        %p190 = pneg %p101
      $region22: #{center_attention_forward.1} parent=11 // pred_check_branch
        %192 = sbr.rel (%p190) target = $region24
      $region23: #{center_attention_forward.1} parent=11 // pred_region
        _
      $region24: #{center_attention_forward.1} parent=11 // pred_fallthru
        _
      // Predicated region
      $region25: #{center_attention_forward.1} parent=11 // pred_check
        %p193 = pneg %p122
      $region26: #{center_attention_forward.1} parent=11 // pred_check_branch
        %195 = sbr.rel (%p193) target = $region28
      $region27: #{center_attention_forward.1} parent=11 // pred_region
        _
      $region28: #{center_attention_forward.1} parent=11 // pred_fallthru
        _
      // Predicated region
      $region29: #{center_attention_forward.1} parent=11 // pred_check
        %p196 = pneg %p143
      $region30: #{center_attention_forward.1} parent=11 // pred_check_branch
        %198 = sbr.rel (%p196) target = $region32
      $region31: #{center_attention_forward.1} parent=11 // pred_region
        _
      $region32: #{center_attention_forward.1} parent=11 // pred_fallthru
        _
    $region12: #{center_attention_forward.1} parent=5 // pred_fallthru
      _
    %p199 = scmp.lt.s32.totalorder %s12, 2
    // Predicated region
    $region33: #{center_attention_forward.1} parent=5 // pred_check
      %p200 = pneg %p199
    $region34: #{center_attention_forward.1} parent=5 // pred_check_branch
      %202 = sbr.rel (%p200) target = $region36
    $region35: #{center_attention_forward.1} parent=5 // pred_region
      // Predicated region
      $region37: #{center_attention_forward.1} parent=35 // pred_check
        %p203 = pneg %p53
      $region38: #{center_attention_forward.1} parent=35 // pred_check_branch
        %205 = sbr.rel (%p203) target = $region40
      $region39: #{center_attention_forward.1} parent=35 // pred_region
        %p206 = scmp.lt.s32.totalorder %s12, 1
        %s207 = scalar_select %p206, %s12, 1
        %s208 = smul.addr %s207, 32
        %s209 = smul.addr %s208, 8
        %s210 = scalar_lea.vmem %s1, %s209
      $region40: #{center_attention_forward.1} parent=35 // pred_fallthru
        _
    $region36: #{center_attention_forward.1} parent=5 // pred_fallthru
      _
    %p211 = scmp.le.s32.totalorder 1, %s12
    %p212 = scmp.lt.s32.totalorder %s12, 3
    %p213 = pnand %p211, %p212
    %p214 = pneg %p213
    // Predicated region
    $region41: #{center_attention_forward.1} parent=5 // pred_check
      _
    $region42: #{center_attention_forward.1} parent=5 // pred_check_branch
      %216 = sbr.rel (%p213) target = $region44
    $region43: #{center_attention_forward.1} parent=5 // pred_region
      %s217 = ssub.s32 %s12, 1
      %p218 = pneg %p33
      %p219 = pneg %p30
      %p220 = scmp.lt.s32.totalorder %s17, 1
      %s221 = scalar_select %p220, %s17, 1
      %s222 = smul.addr %s221, 32
      %s223 = smul.addr %s222, 8
      %s224 = scalar_lea.vmem %s1, %s223
      %p225 = pneg %p59
      %p226 = pneg %p56
      %p227 = pneg %p80
      %p228 = pneg %p77
      %p229 = pneg %p101
      %p230 = pneg %p98
      %p231 = pneg %p122
      %p232 = pneg %p119
      %p233 = pneg %p143
      %p234 = pneg %p140
      %p235 = pneg %p169
      %p236 = pneg %p166
      %p237 = scmp.lt.s32.totalorder %s17, 1
      %s238 = scalar_select %p237, %s17, 1
      %s239 = smul.addr %s238, 32
      %s240 = smul.addr %s239, 8
      %s241 = scalar_lea.vmem %s6, %s240
      %p242 = scmp.lt.s32.totalorder %s17, 1
      %s243 = scalar_select %p242, %s17, 1
      %s244 = smul.addr %s243, 32
      %s245 = smul.addr %s244, 8
      %s246 = scalar_lea.vmem %s1, %s245
      %p247 = scmp.lt.s32.totalorder %s17, 1
      %s248 = scalar_select %p247, %s17, 1
      %s249 = smul.addr %s248, 32
      %s250 = smul.addr %s249, 8
      %s251 = scalar_lea.vmem %s6, %s250
      %v253 = vld [vmem:[%s246] sm:$0xff]
      %v254 = vld [vmem:[%s246 + $0x8] sm:$0xff]
      %v255 = vld [vmem:[%s246 + $0x10] sm:$0xff]
      %v256 = vld [vmem:[%s246 + $0x18] sm:$0xff]
      %v257 = vld [vmem:[%s246 + $0x20] sm:$0xff]
      %v258 = vld [vmem:[%s246 + $0x28] sm:$0xff]
      %v259 = vld [vmem:[%s246 + $0x30] sm:$0xff]
      %v260 = vld [vmem:[%s246 + $0x38] sm:$0xff]
      %v261 = vld [vmem:[%s246 + $0x40] sm:$0xff]
      %v262 = vld [vmem:[%s246 + $0x48] sm:$0xff]
      %v263 = vld [vmem:[%s246 + $0x50] sm:$0xff]
      %v264 = vld [vmem:[%s246 + $0x58] sm:$0xff]
      %v265 = vld [vmem:[%s246 + $0x60] sm:$0xff]
      %v266 = vld [vmem:[%s246 + $0x68] sm:$0xff]
      %v267 = vld [vmem:[%s246 + $0x70] sm:$0xff]
      %v268 = vld [vmem:[%s246 + $0x78] sm:$0xff]
      %v269 = vld [vmem:[%s246 + $0x80] sm:$0xff]
      %v270 = vld [vmem:[%s246 + $0x88] sm:$0xff]
      %v271 = vld [vmem:[%s246 + $0x90] sm:$0xff]
      %v272 = vld [vmem:[%s246 + $0x98] sm:$0xff]
      %v273 = vld [vmem:[%s246 + $0xa0] sm:$0xff]
      %v274 = vld [vmem:[%s246 + $0xa8] sm:$0xff]
      %v275 = vld [vmem:[%s246 + $0xb0] sm:$0xff]
      %v276 = vld [vmem:[%s246 + $0xb8] sm:$0xff]
      %v277 = vld [vmem:[%s246 + $0xc0] sm:$0xff]
      %v278 = vld [vmem:[%s246 + $0xc8] sm:$0xff]
      %v279 = vld [vmem:[%s246 + $0xd0] sm:$0xff]
      %v280 = vld [vmem:[%s246 + $0xd8] sm:$0xff]
      %v281 = vld [vmem:[%s246 + $0xe0] sm:$0xff]
      %v282 = vld [vmem:[%s246 + $0xe8] sm:$0xff]
      %v283 = vld [vmem:[%s246 + $0xf0] sm:$0xff]
      %v284 = vld [vmem:[%s246 + $0xf8] sm:$0xff]
      %v285 = vpack.c.bf16 %v254, %v253
      %v286 = vpack.c.bf16 %v256, %v255
      %v287 = vpack.c.bf16 %v258, %v257
      %v288 = vpack.c.bf16 %v260, %v259
      %v289 = vpack.c.bf16 %v262, %v261
      %v290 = vpack.c.bf16 %v264, %v263
      %v291 = vpack.c.bf16 %v266, %v265
      %v292 = vpack.c.bf16 %v268, %v267
      %v293 = vpack.c.bf16 %v270, %v269
      %v294 = vpack.c.bf16 %v272, %v271
      %v295 = vpack.c.bf16 %v274, %v273
      %v296 = vpack.c.bf16 %v276, %v275
      %v297 = vpack.c.bf16 %v278, %v277
      %v298 = vpack.c.bf16 %v280, %v279
      %v299 = vpack.c.bf16 %v282, %v281
      %v300 = vpack.c.bf16 %v284, %v283
      %v301 = vld [vmem:[%s2] sm:$0xf]
      %v302 = vld [vmem:[%s2 + $0x4] sm:$0xf]
      %v303 = vld [vmem:[%s2 + $0x8] sm:$0xf]
      %v304 = vld [vmem:[%s2 + $0xc] sm:$0xf]
      %v305 = vld [vmem:[%s2 + $0x10] sm:$0xf]
      %v306 = vld [vmem:[%s2 + $0x14] sm:$0xf]
      %v307 = vld [vmem:[%s2 + $0x18] sm:$0xf]
      %v308 = vld [vmem:[%s2 + $0x1c] sm:$0xf]
      %v309 = vld [vmem:[%s2 + $0x20] sm:$0xf]
      %v310 = vld [vmem:[%s2 + $0x24] sm:$0xf]
      %v311 = vld [vmem:[%s2 + $0x28] sm:$0xf]
      %v312 = vld [vmem:[%s2 + $0x2c] sm:$0xf]
      %v313 = vld [vmem:[%s3] sm:$0xff]
      %v314 = vld [vmem:[%s3 + $0x8] sm:$0xff]
      %v315 = vld [vmem:[%s3 + $0x10] sm:$0xff]
      %v316 = vld [vmem:[%s3 + $0x18] sm:$0xff]
      %v317 = vld [vmem:[%s3 + $0x20] sm:$0xff]
      %v318 = vld [vmem:[%s3 + $0x28] sm:$0xff]
      %v319 = vld [vmem:[%s3 + $0x30] sm:$0xff]
      %v320 = vld [vmem:[%s3 + $0x38] sm:$0xff]
      %v321 = vld [vmem:[%s3 + $0x40] sm:$0xff]
      %v322 = vld [vmem:[%s3 + $0x48] sm:$0xff]
      %v323 = vld [vmem:[%s3 + $0x50] sm:$0xff]
      %v324 = vld [vmem:[%s3 + $0x58] sm:$0xff]
      %326 = vset.pattern.permute.xlu0 0
      %327 = vperm.xlu0 %326, %v313
      %v328 = vpop.permute.xlu0 %327
      %331 = vset.pattern.permute.xlu0 0
      %332 = vperm.xlu0 %331, %v314
      %v333 = vpop.permute.xlu0 %332
      %336 = vset.pattern.permute.xlu0 0
      %337 = vperm.xlu0 %336, %v315
      %v338 = vpop.permute.xlu0 %337
      %341 = vset.pattern.permute.xlu0 0
      %342 = vperm.xlu0 %341, %v316
      %v343 = vpop.permute.xlu0 %342
      %346 = vset.pattern.permute.xlu0 0
      %347 = vperm.xlu0 %346, %v317
      %v348 = vpop.permute.xlu0 %347
      %351 = vset.pattern.permute.xlu0 0
      %352 = vperm.xlu0 %351, %v318
      %v353 = vpop.permute.xlu0 %352
      %356 = vset.pattern.permute.xlu0 0
      %357 = vperm.xlu0 %356, %v319
      %v358 = vpop.permute.xlu0 %357
      %361 = vset.pattern.permute.xlu0 0
      %362 = vperm.xlu0 %361, %v320
      %v363 = vpop.permute.xlu0 %362
      %366 = vset.pattern.permute.xlu0 0
      %367 = vperm.xlu0 %366, %v321
      %v368 = vpop.permute.xlu0 %367
      %371 = vset.pattern.permute.xlu0 0
      %372 = vperm.xlu0 %371, %v322
      %v373 = vpop.permute.xlu0 %372
      %376 = vset.pattern.permute.xlu0 0
      %377 = vperm.xlu0 %376, %v323
      %v378 = vpop.permute.xlu0 %377
      %381 = vset.pattern.permute.xlu0 0
      %382 = vperm.xlu0 %381, %v324
      %v383 = vpop.permute.xlu0 %382
      %v397 = vunpack.c.l.b16 %v301
      %v398 = vunpack.c.l.b16 %v302
      %v399 = vunpack.c.l.b16 %v303
      %v400 = vunpack.c.l.b16 %v304
      %v401 = vunpack.c.l.b16 %v305
      %v402 = vunpack.c.l.b16 %v306
      %v403 = vunpack.c.l.b16 %v307
      %v404 = vunpack.c.l.b16 %v308
      %v405 = vunpack.c.l.b16 %v309
      %v406 = vunpack.c.l.b16 %v310
      %v407 = vunpack.c.l.b16 %v311
      %v408 = vunpack.c.l.b16 %v312
      %v409 = vpack.c.b16 %v398, %v397
      %v410 = vpack.c.b16 %v400, %v399
      %v411 = vpack.c.b16 %v402, %v401
      %v412 = vpack.c.b16 %v404, %v403
      %v413 = vpack.c.b16 %v406, %v405
      %v414 = vpack.c.b16 %v408, %v407
      %vm415 = vcmask 261120
      %v417 = vsel %vm415, %v409, 0
      %v420 = vsel %vm415, %v410, 0
      %v423 = vsel %vm415, %v411, 0
      %v426 = vsel %vm415, %v412, 0
      %v429 = vsel %vm415, %v413, 0
      %v432 = vsel %vm415, %v414, 0
      %v435 = vsel %vm415, %v285, 0
      %v438 = vsel %vm415, %v286, 0
      %v441 = vsel %vm415, %v287, 0
      %v444 = vsel %vm415, %v288, 0
      %v447 = vsel %vm415, %v289, 0
      %v450 = vsel %vm415, %v290, 0
      %v453 = vsel %vm415, %v291, 0
      %v456 = vsel %vm415, %v292, 0
      %v459 = vsel %vm415, %v293, 0
      %v462 = vsel %vm415, %v294, 0
      %v465 = vsel %vm415, %v295, 0
      %v468 = vsel %vm415, %v296, 0
      %v471 = vsel %vm415, %v297, 0
      %v474 = vsel %vm415, %v298, 0
      %v477 = vsel %vm415, %v299, 0
      %v480 = vsel %vm415, %v300, 0
      %482 = vmatprep.subr.bf16.mxu0 0
      %483 = vmatpush1.bf16.xpose.msra.mxu0 %v435
      %484 = vmatprep.subr.bf16.mxu0 0
      %485 = vmatpush1.bf16.xpose.msra.mxu0 %v438
      %486 = vmatprep.subr.bf16.mxu0 0
      %487 = vmatpush1.bf16.xpose.msra.mxu0 %v441
      %488 = vmatprep.subr.bf16.mxu0 0
      %489 = vmatpush1.bf16.xpose.msra.mxu0 %v444
      %490 = vmatprep.subr.bf16.mxu0 0
      %491 = vmatpush1.bf16.xpose.msra.mxu0 %v447
      %492 = vmatprep.subr.bf16.mxu0 0
      %493 = vmatpush1.bf16.xpose.msra.mxu0 %v450
      %494 = vmatprep.subr.bf16.mxu0 0
      %495 = vmatpush1.bf16.xpose.msra.mxu0 %v453
      %496 = vmatprep.subr.bf16.mxu0 0
      %497 = vmatpush1.bf16.xpose.msra.mxu0 %v456
      %498 = vmatprep.subr.bf16.mxu0 0
      %499 = vmatpush1.bf16.xpose.msra.mxu0 %v459
      %500 = vmatprep.subr.bf16.mxu0 0
      %501 = vmatpush1.bf16.xpose.msra.mxu0 %v462
      %502 = vmatprep.subr.bf16.mxu0 0
      %503 = vmatpush1.bf16.xpose.msra.mxu0 %v465
      %504 = vmatprep.subr.bf16.mxu0 0
      %505 = vmatpush1.bf16.xpose.msra.mxu0 %v468
      %506 = vmatprep.subr.bf16.mxu0 0
      %507 = vmatpush1.bf16.xpose.msra.mxu0 %v471
      %508 = vmatprep.subr.bf16.mxu0 0
      %509 = vmatpush1.bf16.xpose.msra.mxu0 %v474
      %510 = vmatprep.subr.bf16.mxu0 0
      %511 = vmatpush1.bf16.xpose.msra.mxu0 %v477
      %512 = vmatprep.subr.bf16.mxu0 0
      %513 = vmatpush1.bf16.xpose.msra.mxu0 %v480
      %514 = vmatprep.mubr.bf16.mxu0 0
      %515 = vmatmul.mubr.bf16.gmra.mrb[0].mxu0 %v417
      %v516 = vpop.f32.mrb[0].mxu0
      %v517 = vadd.f32 %v328, %v516
      %v518 = vpop.f32.mrb[0].mxu0
      %v519 = vadd.f32 %v328, %v518
      %v520 = vpop.f32.mrb[0].mxu0
      %v521 = vadd.f32 %v333, %v520
      %v522 = vpop.f32.mrb[0].mxu0
      %v523 = vadd.f32 %v333, %v522
      %524 = vmatprep.mubr.bf16.mxu0 0
      %525 = vmatmul.mubr.bf16.gmra.mrb[0].mxu0 %v420
      %v526 = vpop.f32.mrb[0].mxu0
      %v527 = vadd.f32 %v338, %v526
      %v528 = vpop.f32.mrb[0].mxu0
      %v529 = vadd.f32 %v338, %v528
      %v530 = vpop.f32.mrb[0].mxu0
      %v531 = vadd.f32 %v343, %v530
      %v532 = vpop.f32.mrb[0].mxu0
      %v533 = vadd.f32 %v343, %v532
      %534 = vmatprep.mubr.bf16.mxu0 0
      %535 = vmatmul.mubr.bf16.gmra.mrb[0].mxu0 %v423
      %v536 = vpop.f32.mrb[0].mxu0
      %v537 = vadd.f32 %v348, %v536
      %v538 = vpop.f32.mrb[0].mxu0
      %v539 = vadd.f32 %v348, %v538
      %v540 = vpop.f32.mrb[0].mxu0
      %v541 = vadd.f32 %v353, %v540
      %v542 = vpop.f32.mrb[0].mxu0
      %v543 = vadd.f32 %v353, %v542
      %544 = vmatprep.mubr.bf16.mxu0 0
      %545 = vmatmul.mubr.bf16.gmra.mrb[0].mxu0 %v426
      %v546 = vpop.f32.mrb[0].mxu0
      %v547 = vadd.f32 %v358, %v546
      %v548 = vpop.f32.mrb[0].mxu0
      %v549 = vadd.f32 %v358, %v548
      %v550 = vpop.f32.mrb[0].mxu0
      %v551 = vadd.f32 %v363, %v550
      %v552 = vpop.f32.mrb[0].mxu0
      %v553 = vadd.f32 %v363, %v552
      %554 = vmatprep.mubr.bf16.mxu0 0
      %555 = vmatmul.mubr.bf16.gmra.mrb[0].mxu0 %v429
      %v556 = vpop.f32.mrb[0].mxu0
      %v557 = vadd.f32 %v368, %v556
      %v558 = vpop.f32.mrb[0].mxu0
      %v559 = vadd.f32 %v368, %v558
      %v560 = vpop.f32.mrb[0].mxu0
      %v561 = vadd.f32 %v373, %v560
      %v562 = vpop.f32.mrb[0].mxu0
      %v563 = vadd.f32 %v373, %v562
      %564 = vmatprep.mubr.bf16.mxu0 0
      %565 = vmatmul.mubr.bf16.gmra.mrb[0].mxu0 %v432
      %v566 = vpop.f32.mrb[0].mxu0
      %v567 = vadd.f32 %v378, %v566
      %v568 = vpop.f32.mrb[0].mxu0
      %v569 = vadd.f32 %v378, %v568
      %v570 = vpop.f32.mrb[0].mxu0
      %v571 = vadd.f32 %v383, %v570
      %v572 = vpop.f32.mrb[0].mxu0
      %v573 = vadd.f32 %v383, %v572
      %574 = vdwg.mxu0
      %575 = vrot.lane.b32.xlu0 %v537, 17
      %v576 = vpop.permute.xlu0 %575
      %577 = vrot.lane.b32.xlu0 %v541, 17
      %v578 = vpop.permute.xlu0 %577
      %579 = vrot.lane.b32.xlu0 %v539, 17
      %v580 = vpop.permute.xlu0 %579
      %581 = vrot.lane.b32.xlu0 %v543, 17
      %v582 = vpop.permute.xlu0 %581
      %v583 = vlaneseq
      %v584 = vand.u32 %v583, 127
      %vm585 = vcmp.lt.s32.totalorder %v584, 17
      %v586 = vsel %vm585, %v576, %v580
      %v587 = vsel %vm585, %v578, %v582
      %v588 = vsel %vm585, %v580, %v576
      %v589 = vsel %vm585, %v582, %v578
      %v590 = vmul.f32 %v517, %v588
      %v591 = vmul.f32 %v519, %v586
      %v592 = vmul.f32 %v521, %v589
      %v593 = vmul.f32 %v523, %v587
      %v594 = vadd.f32 %v590, %v592
      %v595 = vrot.slane %v594, 4
      %v596 = vadd.f32 %v594, %v595
      %v597 = vrot.slane %v596, 2
      %v598 = vadd.f32 %v596, %v597
      %v599 = vrot.slane %v598, 1
      %v600 = vadd.f32 %v598, %v599
      %v601 = vadd.f32 %v591, %v593
      %v602 = vrot.slane %v601, 4
      %v603 = vadd.f32 %v601, %v602
      %v604 = vrot.slane %v603, 2
      %v605 = vadd.f32 %v603, %v604
      %v606 = vrot.slane %v605, 1
      %v607 = vadd.f32 %v605, %v606
      %v608 = vld [vmem:[%s0] ss:$8 sm:$0x3]
      %v610 = vlaneseq
      %v611 = vshrl.u32 %v610, 7
      %v612 = vsub.s32 0, %v611
      %v613 = vrot.slane %v608, %v612
      %v614 = vlaneseq
      %v615 = vshrl.u32 %v614, 7
      %v616 = vsub.s32 1, %v615
      %v617 = vrot.slane %v608, %v616
      %v620 = vmul.f32 %v600, %v613
      %v621 = vmul.f32 %v607, %v617
      %622 = vrot.lane.b32.xlu0 %v537, 16
      %v623 = vpop.permute.xlu0 %622
      %624 = vrot.lane.b32.xlu0 %v541, 16
      %v625 = vpop.permute.xlu0 %624
      %626 = vrot.lane.b32.xlu0 %v539, 16
      %v627 = vpop.permute.xlu0 %626
      %628 = vrot.lane.b32.xlu0 %v543, 16
      %v629 = vpop.permute.xlu0 %628
      %vm630 = vcmp.lt.s32.totalorder %v584, 16
      %v631 = vsel %vm630, %v623, %v627
      %v632 = vsel %vm630, %v625, %v629
      %v633 = vsel %vm630, %v627, %v623
      %v634 = vsel %vm630, %v629, %v625
      %v635 = vmul.f32 %v517, %v633
      %v636 = vmul.f32 %v519, %v631
      %v637 = vmul.f32 %v521, %v634
      %v638 = vmul.f32 %v523, %v632
      %v639 = vadd.f32 %v635, %v637
      %v640 = vrot.slane %v639, 4
      %v641 = vadd.f32 %v639, %v640
      %v642 = vrot.slane %v641, 2
      %v643 = vadd.f32 %v641, %v642
      %v644 = vrot.slane %v643, 1
      %v645 = vadd.f32 %v643, %v644
      %v646 = vadd.f32 %v636, %v638
      %v647 = vrot.slane %v646, 4
      %v648 = vadd.f32 %v646, %v647
      %v649 = vrot.slane %v648, 2
      %v650 = vadd.f32 %v648, %v649
      %v651 = vrot.slane %v650, 1
      %v652 = vadd.f32 %v650, %v651
      %s653 = scalar_lea.vmem %s0, 1
      %v654 = vld [vmem:[%s653] ss:$8 sm:$0x3]
      %v656 = vlaneseq
      %v657 = vshrl.u32 %v656, 7
      %v658 = vsub.s32 0, %v657
      %v659 = vrot.slane %v654, %v658
      %v660 = vlaneseq
      %v661 = vshrl.u32 %v660, 7
      %v662 = vsub.s32 1, %v661
      %v663 = vrot.slane %v654, %v662
      %v666 = vmul.f32 %v645, %v659
      %v667 = vmul.f32 %v652, %v663
      %668 = vrot.lane.b32.xlu0 %v537, 15
      %v669 = vpop.permute.xlu0 %668
      %670 = vrot.lane.b32.xlu0 %v541, 15
      %v671 = vpop.permute.xlu0 %670
      %672 = vrot.lane.b32.xlu0 %v539, 15
      %v673 = vpop.permute.xlu0 %672
      %674 = vrot.lane.b32.xlu0 %v543, 15
      %v675 = vpop.permute.xlu0 %674
      %vm676 = vcmp.lt.s32.totalorder %v584, 15
      %v677 = vsel %vm676, %v669, %v673
      %v678 = vsel %vm676, %v671, %v675
      %v679 = vsel %vm676, %v673, %v669
      %v680 = vsel %vm676, %v675, %v671
      %v681 = vmul.f32 %v517, %v679
      %v682 = vmul.f32 %v519, %v677
      %v683 = vmul.f32 %v521, %v680
      %v684 = vmul.f32 %v523, %v678
      %v685 = vadd.f32 %v681, %v683
      %v686 = vrot.slane %v685, 4
      %v687 = vadd.f32 %v685, %v686
      %v688 = vrot.slane %v687, 2
      %v689 = vadd.f32 %v687, %v688
      %v690 = vrot.slane %v689, 1
      %v691 = vadd.f32 %v689, %v690
      %v692 = vadd.f32 %v682, %v684
      %v693 = vrot.slane %v692, 4
      %v694 = vadd.f32 %v692, %v693
      %v695 = vrot.slane %v694, 2
      %v696 = vadd.f32 %v694, %v695
      %v697 = vrot.slane %v696, 1
      %v698 = vadd.f32 %v696, %v697
      %s699 = scalar_lea.vmem %s0, 2
      %v700 = vld [vmem:[%s699] ss:$8 sm:$0x3]
      %v702 = vlaneseq
      %v703 = vshrl.u32 %v702, 7
      %v704 = vsub.s32 0, %v703
      %v705 = vrot.slane %v700, %v704
      %v706 = vlaneseq
      %v707 = vshrl.u32 %v706, 7
      %v708 = vsub.s32 1, %v707
      %v709 = vrot.slane %v700, %v708
      %v712 = vmul.f32 %v691, %v705
      %v713 = vmul.f32 %v698, %v709
      %714 = vrot.lane.b32.xlu0 %v537, 1
      %v715 = vpop.permute.xlu0 %714
      %716 = vrot.lane.b32.xlu0 %v541, 1
      %v717 = vpop.permute.xlu0 %716
      %718 = vrot.lane.b32.xlu0 %v539, 1
      %v719 = vpop.permute.xlu0 %718
      %720 = vrot.lane.b32.xlu0 %v543, 1
      %v721 = vpop.permute.xlu0 %720
      %vm722 = vcmp.lt.s32.totalorder %v584, 1
      %v723 = vsel %vm722, %v715, %v719
      %v724 = vsel %vm722, %v717, %v721
      %v725 = vsel %vm722, %v719, %v715
      %v726 = vsel %vm722, %v721, %v717
      %v727 = vmul.f32 %v517, %v725
      %v728 = vmul.f32 %v519, %v723
      %v729 = vmul.f32 %v521, %v726
      %v730 = vmul.f32 %v523, %v724
      %v731 = vadd.f32 %v727, %v729
      %v732 = vrot.slane %v731, 4
      %v733 = vadd.f32 %v731, %v732
      %v734 = vrot.slane %v733, 2
      %v735 = vadd.f32 %v733, %v734
      %v736 = vrot.slane %v735, 1
      %v737 = vadd.f32 %v735, %v736
      %v738 = vadd.f32 %v728, %v730
      %v739 = vrot.slane %v738, 4
      %v740 = vadd.f32 %v738, %v739
      %v741 = vrot.slane %v740, 2
      %v742 = vadd.f32 %v740, %v741
      %v743 = vrot.slane %v742, 1
      %v744 = vadd.f32 %v742, %v743
      %s745 = scalar_lea.vmem %s0, 3
      %v746 = vld [vmem:[%s745] ss:$8 sm:$0x3]
      %v748 = vlaneseq
      %v749 = vshrl.u32 %v748, 7
      %v750 = vsub.s32 0, %v749
      %v751 = vrot.slane %v746, %v750
      %v752 = vlaneseq
      %v753 = vshrl.u32 %v752, 7
      %v754 = vsub.s32 1, %v753
      %v755 = vrot.slane %v746, %v754
      %v758 = vmul.f32 %v737, %v751
      %v759 = vmul.f32 %v744, %v755
      %v760 = vmul.f32 %v517, %v537
      %v761 = vmul.f32 %v519, %v539
      %v762 = vmul.f32 %v521, %v541
      %v763 = vmul.f32 %v523, %v543
      %v764 = vadd.f32 %v760, %v762
      %v765 = vrot.slane %v764, 4
      %v766 = vadd.f32 %v764, %v765
      %v767 = vrot.slane %v766, 2
      %v768 = vadd.f32 %v766, %v767
      %v769 = vrot.slane %v768, 1
      %v770 = vadd.f32 %v768, %v769
      %v771 = vadd.f32 %v761, %v763
      %v772 = vrot.slane %v771, 4
      %v773 = vadd.f32 %v771, %v772
      %v774 = vrot.slane %v773, 2
      %v775 = vadd.f32 %v773, %v774
      %v776 = vrot.slane %v775, 1
      %v777 = vadd.f32 %v775, %v776
      %s778 = scalar_lea.vmem %s0, 4
      %v779 = vld [vmem:[%s778] ss:$8 sm:$0x3]
      %v781 = vlaneseq
      %v782 = vshrl.u32 %v781, 7
      %v783 = vsub.s32 0, %v782
      %v784 = vrot.slane %v779, %v783
      %v785 = vlaneseq
      %v786 = vshrl.u32 %v785, 7
      %v787 = vsub.s32 1, %v786
      %v788 = vrot.slane %v779, %v787
      %v791 = vmul.f32 %v770, %v784
      %v792 = vmul.f32 %v777, %v788
      %793 = vrot.lane.b32.xlu0 %v537, 127
      %v794 = vpop.permute.xlu0 %793
      %795 = vrot.lane.b32.xlu0 %v541, 127
      %v796 = vpop.permute.xlu0 %795
      %797 = vrot.lane.b32.xlu0 %v539, 127
      %v798 = vpop.permute.xlu0 %797
      %799 = vrot.lane.b32.xlu0 %v543, 127
      %v800 = vpop.permute.xlu0 %799
      %vm801 = vcmp.lt.s32.totalorder %v584, 127
      %v802 = vsel %vm801, %v794, %v798
      %v803 = vsel %vm801, %v796, %v800
      %v804 = vsel %vm801, %v798, %v794
      %v805 = vsel %vm801, %v800, %v796
      %v806 = vmul.f32 %v517, %v802
      %v807 = vmul.f32 %v519, %v804
      %v808 = vmul.f32 %v521, %v803
      %v809 = vmul.f32 %v523, %v805
      %v810 = vadd.f32 %v806, %v808
      %v811 = vrot.slane %v810, 4
      %v812 = vadd.f32 %v810, %v811
      %v813 = vrot.slane %v812, 2
      %v814 = vadd.f32 %v812, %v813
      %v815 = vrot.slane %v814, 1
      %v816 = vadd.f32 %v814, %v815
      %v817 = vadd.f32 %v807, %v809
      %v818 = vrot.slane %v817, 4
      %v819 = vadd.f32 %v817, %v818
      %v820 = vrot.slane %v819, 2
      %v821 = vadd.f32 %v819, %v820
      %v822 = vrot.slane %v821, 1
      %v823 = vadd.f32 %v821, %v822
      %s824 = scalar_lea.vmem %s0, 5
      %v825 = vld [vmem:[%s824] ss:$8 sm:$0x3]
      %v827 = vlaneseq
      %v828 = vshrl.u32 %v827, 7
      %v829 = vsub.s32 0, %v828
      %v830 = vrot.slane %v825, %v829
      %v831 = vlaneseq
      %v832 = vshrl.u32 %v831, 7
      %v833 = vsub.s32 1, %v832
      %v834 = vrot.slane %v825, %v833
      %v837 = vmul.f32 %v816, %v830
      %v838 = vmul.f32 %v823, %v834
      %839 = vrot.lane.b32.xlu0 %v537, 113
      %v840 = vpop.permute.xlu0 %839
      %841 = vrot.lane.b32.xlu0 %v541, 113
      %v842 = vpop.permute.xlu0 %841
      %843 = vrot.lane.b32.xlu0 %v539, 113
      %v844 = vpop.permute.xlu0 %843
      %845 = vrot.lane.b32.xlu0 %v543, 113
      %v846 = vpop.permute.xlu0 %845
      %vm847 = vcmp.lt.s32.totalorder %v584, 113
      %v848 = vsel %vm847, %v840, %v844
      %v849 = vsel %vm847, %v842, %v846
      %v850 = vsel %vm847, %v844, %v840
      %v851 = vsel %vm847, %v846, %v842
      %v852 = vmul.f32 %v517, %v848
      %v853 = vmul.f32 %v519, %v850
      %v854 = vmul.f32 %v521, %v849
      %v855 = vmul.f32 %v523, %v851
      %v856 = vadd.f32 %v852, %v854
      %v857 = vrot.slane %v856, 4
      %v858 = vadd.f32 %v856, %v857
      %v859 = vrot.slane %v858, 2
      %v860 = vadd.f32 %v858, %v859
      %v861 = vrot.slane %v860, 1
      %v862 = vadd.f32 %v860, %v861
      %v863 = vadd.f32 %v853, %v855
      %v864 = vrot.slane %v863, 4
      %v865 = vadd.f32 %v863, %v864
      %v866 = vrot.slane %v865, 2
      %v867 = vadd.f32 %v865, %v866
      %v868 = vrot.slane %v867, 1
      %v869 = vadd.f32 %v867, %v868
      %s870 = scalar_lea.vmem %s0, 6
      %v871 = vld [vmem:[%s870] ss:$8 sm:$0x3]
      %v873 = vlaneseq
      %v874 = vshrl.u32 %v873, 7
      %v875 = vsub.s32 0, %v874
      %v876 = vrot.slane %v871, %v875
      %v877 = vlaneseq
      %v878 = vshrl.u32 %v877, 7
      %v879 = vsub.s32 1, %v878
      %v880 = vrot.slane %v871, %v879
      %v883 = vmul.f32 %v862, %v876
      %v884 = vmul.f32 %v869, %v880
      %885 = vrot.lane.b32.xlu0 %v537, 112
      %v886 = vpop.permute.xlu0 %885
      %887 = vrot.lane.b32.xlu0 %v541, 112
      %v888 = vpop.permute.xlu0 %887
      %889 = vrot.lane.b32.xlu0 %v539, 112
      %v890 = vpop.permute.xlu0 %889
      %891 = vrot.lane.b32.xlu0 %v543, 112
      %v892 = vpop.permute.xlu0 %891
      %vm893 = vcmp.lt.s32.totalorder %v584, 112
      %v894 = vsel %vm893, %v886, %v890
      %v895 = vsel %vm893, %v888, %v892
      %v896 = vsel %vm893, %v890, %v886
      %v897 = vsel %vm893, %v892, %v888
      %v898 = vmul.f32 %v517, %v894
      %v899 = vmul.f32 %v519, %v896
      %v900 = vmul.f32 %v521, %v895
      %v901 = vmul.f32 %v523, %v897
      %v902 = vadd.f32 %v898, %v900
      %v903 = vrot.slane %v902, 4
      %v904 = vadd.f32 %v902, %v903
      %v905 = vrot.slane %v904, 2
      %v906 = vadd.f32 %v904, %v905
      %v907 = vrot.slane %v906, 1
      %v908 = vadd.f32 %v906, %v907
      %v909 = vadd.f32 %v899, %v901
      %v910 = vrot.slane %v909, 4
      %v911 = vadd.f32 %v909, %v910
      %v912 = vrot.slane %v911, 2
      %v913 = vadd.f32 %v911, %v912
      %v914 = vrot.slane %v913, 1
      %v915 = vadd.f32 %v913, %v914
      %s916 = scalar_lea.vmem %s0, 7
      %v917 = vld [vmem:[%s916] ss:$8 sm:$0x3]
      %v919 = vlaneseq
      %v920 = vshrl.u32 %v919, 7
      %v921 = vsub.s32 0, %v920
      %v922 = vrot.slane %v917, %v921
      %v923 = vlaneseq
      %v924 = vshrl.u32 %v923, 7
      %v925 = vsub.s32 1, %v924
      %v926 = vrot.slane %v917, %v925
      %v929 = vmul.f32 %v908, %v922
      %v930 = vmul.f32 %v915, %v926
      %931 = vrot.lane.b32.xlu0 %v537, 111
      %v932 = vpop.permute.xlu0 %931
      %933 = vrot.lane.b32.xlu0 %v541, 111
      %v934 = vpop.permute.xlu0 %933
      %935 = vrot.lane.b32.xlu0 %v539, 111
      %v936 = vpop.permute.xlu0 %935
      %937 = vrot.lane.b32.xlu0 %v543, 111
      %v938 = vpop.permute.xlu0 %937
      %vm939 = vcmp.lt.s32.totalorder %v584, 111
      %v940 = vsel %vm939, %v932, %v936
      %v941 = vsel %vm939, %v934, %v938
      %v942 = vsel %vm939, %v936, %v932
      %v943 = vsel %vm939, %v938, %v934
      %v944 = vmul.f32 %v517, %v940
      %v945 = vmul.f32 %v519, %v942
      %v946 = vmul.f32 %v521, %v941
      %v947 = vmul.f32 %v523, %v943
      %v948 = vadd.f32 %v944, %v946
      %v949 = vrot.slane %v948, 4
      %v950 = vadd.f32 %v948, %v949
      %v951 = vrot.slane %v950, 2
      %v952 = vadd.f32 %v950, %v951
      %v953 = vrot.slane %v952, 1
      %v954 = vadd.f32 %v952, %v953
      %v955 = vadd.f32 %v945, %v947
      %v956 = vrot.slane %v955, 4
      %v957 = vadd.f32 %v955, %v956
      %v958 = vrot.slane %v957, 2
      %v959 = vadd.f32 %v957, %v958
      %v960 = vrot.slane %v959, 1
      %v961 = vadd.f32 %v959, %v960
      %s962 = scalar_lea.vmem %s0, 16
      %v963 = vld [vmem:[%s962] ss:$8 sm:$0x3]
      %v965 = vlaneseq
      %v966 = vshrl.u32 %v965, 7
      %v967 = vsub.s32 0, %v966
      %v968 = vrot.slane %v963, %v967
      %v969 = vlaneseq
      %v970 = vshrl.u32 %v969, 7
      %v971 = vsub.s32 1, %v970
      %v972 = vrot.slane %v963, %v971
      %v975 = vmul.f32 %v954, %v968
      %v976 = vmul.f32 %v961, %v972
      %v977 = vmax.f32 %v620, %v666
      %v978 = vmax.f32 %v621, %v667
      %v979 = vmax.f32 %v977, %v712
      %v980 = vmax.f32 %v978, %v713
      %v981 = vmax.f32 %v979, %v758
      %v982 = vmax.f32 %v980, %v759
      %v983 = vmax.f32 %v981, %v791
      %v984 = vmax.f32 %v982, %v792
      %v985 = vmax.f32 %v983, %v837
      %v986 = vmax.f32 %v984, %v838
      %v987 = vmax.f32 %v985, %v883
      %v988 = vmax.f32 %v986, %v884
      %v989 = vmax.f32 %v987, %v929
      %v990 = vmax.f32 %v988, %v930
      %v991 = vmax.f32 %v989, %v975
      %v992 = vmax.f32 %v990, %v976
      %v993 = vsub.f32 %v620, %v991
      %v994 = vsub.f32 %v621, %v992
      %v995 = vmul.f32 %v993, 1.442695
      %v996 = vpow.pop %v995
      %v997 = vmul.f32 %v994, 1.442695
      %v998 = vpow.pop %v997
      %v999 = vsub.f32 %v666, %v991
      %v1000 = vsub.f32 %v667, %v992
      %v1001 = vmul.f32 %v999, 1.442695
      %v1002 = vpow.pop %v1001
      %v1003 = vmul.f32 %v1000, 1.442695
      %v1004 = vpow.pop %v1003
      %v1005 = vsub.f32 %v712, %v991
      %v1006 = vsub.f32 %v713, %v992
      %v1007 = vmul.f32 %v1005, 1.442695
      %v1008 = vpow.pop %v1007
      %v1009 = vmul.f32 %v1006, 1.442695
      %v1010 = vpow.pop %v1009
      %v1011 = vsub.f32 %v758, %v991
      %v1012 = vsub.f32 %v759, %v992
      %v1013 = vmul.f32 %v1011, 1.442695
      %v1014 = vpow.pop %v1013
      %v1015 = vmul.f32 %v1012, 1.442695
      %v1016 = vpow.pop %v1015
      %v1017 = vsub.f32 %v791, %v991
      %v1018 = vsub.f32 %v792, %v992
      %v1019 = vmul.f32 %v1017, 1.442695
      %v1020 = vpow.pop %v1019
      %v1021 = vmul.f32 %v1018, 1.442695
      %v1022 = vpow.pop %v1021
      %v1023 = vsub.f32 %v837, %v991
      %v1024 = vsub.f32 %v838, %v992
      %v1025 = vmul.f32 %v1023, 1.442695
      %v1026 = vpow.pop %v1025
      %v1027 = vmul.f32 %v1024, 1.442695
      %v1028 = vpow.pop %v1027
      %v1029 = vsub.f32 %v883, %v991
      %v1030 = vsub.f32 %v884, %v992
      %v1031 = vmul.f32 %v1029, 1.442695
      %v1032 = vpow.pop %v1031
      %v1033 = vmul.f32 %v1030, 1.442695
      %v1034 = vpow.pop %v1033
      %v1035 = vsub.f32 %v929, %v991
      %v1036 = vsub.f32 %v930, %v992
      %v1037 = vmul.f32 %v1035, 1.442695
      %v1038 = vpow.pop %v1037
      %v1039 = vmul.f32 %v1036, 1.442695
      %v1040 = vpow.pop %v1039
      %v1041 = vsub.f32 %v975, %v991
      %v1042 = vsub.f32 %v976, %v992
      %v1043 = vmul.f32 %v1041, 1.442695
      %v1044 = vpow.pop %v1043
      %v1045 = vmul.f32 %v1042, 1.442695
      %v1046 = vpow.pop %v1045
      %v1047 = vadd.f32 %v996, %v1002
      %v1048 = vadd.f32 %v998, %v1004
      %v1049 = vadd.f32 %v1047, %v1008
      %v1050 = vadd.f32 %v1048, %v1010
      %v1051 = vadd.f32 %v1049, %v1014
      %v1052 = vadd.f32 %v1050, %v1016
      %v1053 = vadd.f32 %v1051, %v1020
      %v1054 = vadd.f32 %v1052, %v1022
      %v1055 = vadd.f32 %v1053, %v1026
      %v1056 = vadd.f32 %v1054, %v1028
      %v1057 = vadd.f32 %v1055, %v1032
      %v1058 = vadd.f32 %v1056, %v1034
      %v1059 = vadd.f32 %v1057, %v1038
      %v1060 = vadd.f32 %v1058, %v1040
      %v1061 = vadd.f32 %v1059, %v1044
      %v1062 = vadd.f32 %v1060, %v1046
      %v1063 = vrcp.pop %v1061
      %v1064 = vrcp.pop %v1062
      %1065 = vrot.lane.b32.xlu0 %v557, 17
      %v1066 = vpop.permute.xlu0 %1065
      %1067 = vrot.lane.b32.xlu0 %v561, 17
      %v1068 = vpop.permute.xlu0 %1067
      %1069 = vrot.lane.b32.xlu0 %v559, 17
      %v1070 = vpop.permute.xlu0 %1069
      %1071 = vrot.lane.b32.xlu0 %v563, 17
      %v1072 = vpop.permute.xlu0 %1071
      %v1073 = vsel %vm585, %v1066, %v1070
      %v1074 = vsel %vm585, %v1068, %v1072
      %v1075 = vsel %vm585, %v1070, %v1066
      %v1076 = vsel %vm585, %v1072, %v1068
      %v1077 = vmul.f32 %v996, %v613
      %v1078 = vmul.f32 %v998, %v617
      %v1079 = vlaneseq
      %v1080 = vshrl.u32 %v1079, 7
      %v1081 = vsub.s32 0, %v1080
      %v1082 = vrot.slane %v1077, %v1081
      %v1083 = vlaneseq
      %v1084 = vshrl.u32 %v1083, 7
      %v1085 = vsub.s32 0, %v1084
      %v1086 = vrot.slane %v1078, %v1085
      %v1087 = vmul.f32 %v1082, %v1075
      %v1088 = vmul.f32 %v1086, %v1073
      %v1089 = vmul.f32 %v1082, %v1076
      %v1090 = vmul.f32 %v1086, %v1074
      %v1091 = vadd.f32 %v1087, 0.0
      %v1092 = vadd.f32 %v1088, 0.0
      %v1093 = vadd.f32 %v1089, 0.0
      %v1094 = vadd.f32 %v1090, 0.0
      %1095 = vrot.lane.b32.xlu0 %v557, 16
      %v1096 = vpop.permute.xlu0 %1095
      %1097 = vrot.lane.b32.xlu0 %v561, 16
      %v1098 = vpop.permute.xlu0 %1097
      %1099 = vrot.lane.b32.xlu0 %v559, 16
      %v1100 = vpop.permute.xlu0 %1099
      %1101 = vrot.lane.b32.xlu0 %v563, 16
      %v1102 = vpop.permute.xlu0 %1101
      %v1103 = vsel %vm630, %v1096, %v1100
      %v1104 = vsel %vm630, %v1098, %v1102
      %v1105 = vsel %vm630, %v1100, %v1096
      %v1106 = vsel %vm630, %v1102, %v1098
      %v1107 = vmul.f32 %v1002, %v659
      %v1108 = vmul.f32 %v1004, %v663
      %v1109 = vlaneseq
      %v1110 = vshrl.u32 %v1109, 7
      %v1111 = vsub.s32 0, %v1110
      %v1112 = vrot.slane %v1107, %v1111
      %v1113 = vlaneseq
      %v1114 = vshrl.u32 %v1113, 7
      %v1115 = vsub.s32 0, %v1114
      %v1116 = vrot.slane %v1108, %v1115
      %v1117 = vmul.f32 %v1112, %v1105
      %v1118 = vmul.f32 %v1116, %v1103
      %v1119 = vmul.f32 %v1112, %v1106
      %v1120 = vmul.f32 %v1116, %v1104
      %v1121 = vadd.f32 %v1091, %v1117
      %v1122 = vadd.f32 %v1092, %v1118
      %v1123 = vadd.f32 %v1093, %v1119
      %v1124 = vadd.f32 %v1094, %v1120
      %1125 = vrot.lane.b32.xlu0 %v557, 15
      %v1126 = vpop.permute.xlu0 %1125
      %1127 = vrot.lane.b32.xlu0 %v561, 15
      %v1128 = vpop.permute.xlu0 %1127
      %1129 = vrot.lane.b32.xlu0 %v559, 15
      %v1130 = vpop.permute.xlu0 %1129
      %1131 = vrot.lane.b32.xlu0 %v563, 15
      %v1132 = vpop.permute.xlu0 %1131
      %v1133 = vsel %vm676, %v1126, %v1130
      %v1134 = vsel %vm676, %v1128, %v1132
      %v1135 = vsel %vm676, %v1130, %v1126
      %v1136 = vsel %vm676, %v1132, %v1128
      %v1137 = vmul.f32 %v1008, %v705
      %v1138 = vmul.f32 %v1010, %v709
      %v1139 = vlaneseq
      %v1140 = vshrl.u32 %v1139, 7
      %v1141 = vsub.s32 0, %v1140
      %v1142 = vrot.slane %v1137, %v1141
      %v1143 = vlaneseq
      %v1144 = vshrl.u32 %v1143, 7
      %v1145 = vsub.s32 0, %v1144
      %v1146 = vrot.slane %v1138, %v1145
      %v1147 = vmul.f32 %v1142, %v1135
      %v1148 = vmul.f32 %v1146, %v1133
      %v1149 = vmul.f32 %v1142, %v1136
      %v1150 = vmul.f32 %v1146, %v1134
      %v1151 = vadd.f32 %v1121, %v1147
      %v1152 = vadd.f32 %v1122, %v1148
      %v1153 = vadd.f32 %v1123, %v1149
      %v1154 = vadd.f32 %v1124, %v1150
      %1155 = vrot.lane.b32.xlu0 %v557, 1
      %v1156 = vpop.permute.xlu0 %1155
      %1157 = vrot.lane.b32.xlu0 %v561, 1
      %v1158 = vpop.permute.xlu0 %1157
      %1159 = vrot.lane.b32.xlu0 %v559, 1
      %v1160 = vpop.permute.xlu0 %1159
      %1161 = vrot.lane.b32.xlu0 %v563, 1
      %v1162 = vpop.permute.xlu0 %1161
      %v1163 = vsel %vm722, %v1156, %v1160
      %v1164 = vsel %vm722, %v1158, %v1162
      %v1165 = vsel %vm722, %v1160, %v1156
      %v1166 = vsel %vm722, %v1162, %v1158
      %v1167 = vmul.f32 %v1014, %v751
      %v1168 = vmul.f32 %v1016, %v755
      %v1169 = vlaneseq
      %v1170 = vshrl.u32 %v1169, 7
      %v1171 = vsub.s32 0, %v1170
      %v1172 = vrot.slane %v1167, %v1171
      %v1173 = vlaneseq
      %v1174 = vshrl.u32 %v1173, 7
      %v1175 = vsub.s32 0, %v1174
      %v1176 = vrot.slane %v1168, %v1175
      %v1177 = vmul.f32 %v1172, %v1165
      %v1178 = vmul.f32 %v1176, %v1163
      %v1179 = vmul.f32 %v1172, %v1166
      %v1180 = vmul.f32 %v1176, %v1164
      %v1181 = vadd.f32 %v1151, %v1177
      %v1182 = vadd.f32 %v1152, %v1178
      %v1183 = vadd.f32 %v1153, %v1179
      %v1184 = vadd.f32 %v1154, %v1180
      %v1185 = vmul.f32 %v1020, %v784
      %v1186 = vmul.f32 %v1022, %v788
      %v1187 = vlaneseq
      %v1188 = vshrl.u32 %v1187, 7
      %v1189 = vsub.s32 0, %v1188
      %v1190 = vrot.slane %v1185, %v1189
      %v1191 = vlaneseq
      %v1192 = vshrl.u32 %v1191, 7
      %v1193 = vsub.s32 0, %v1192
      %v1194 = vrot.slane %v1186, %v1193
      %v1195 = vmul.f32 %v1190, %v557
      %v1196 = vmul.f32 %v1194, %v559
      %v1197 = vmul.f32 %v1190, %v561
      %v1198 = vmul.f32 %v1194, %v563
      %v1199 = vadd.f32 %v1181, %v1195
      %v1200 = vadd.f32 %v1182, %v1196
      %v1201 = vadd.f32 %v1183, %v1197
      %v1202 = vadd.f32 %v1184, %v1198
      %1203 = vrot.lane.b32.xlu0 %v557, 127
      %v1204 = vpop.permute.xlu0 %1203
      %1205 = vrot.lane.b32.xlu0 %v561, 127
      %v1206 = vpop.permute.xlu0 %1205
      %1207 = vrot.lane.b32.xlu0 %v559, 127
      %v1208 = vpop.permute.xlu0 %1207
      %1209 = vrot.lane.b32.xlu0 %v563, 127
      %v1210 = vpop.permute.xlu0 %1209
      %v1211 = vsel %vm801, %v1204, %v1208
      %v1212 = vsel %vm801, %v1206, %v1210
      %v1213 = vsel %vm801, %v1208, %v1204
      %v1214 = vsel %vm801, %v1210, %v1206
      %v1215 = vmul.f32 %v1026, %v830
      %v1216 = vmul.f32 %v1028, %v834
      %v1217 = vlaneseq
      %v1218 = vshrl.u32 %v1217, 7
      %v1219 = vsub.s32 0, %v1218
      %v1220 = vrot.slane %v1215, %v1219
      %v1221 = vlaneseq
      %v1222 = vshrl.u32 %v1221, 7
      %v1223 = vsub.s32 0, %v1222
      %v1224 = vrot.slane %v1216, %v1223
      %v1225 = vmul.f32 %v1220, %v1211
      %v1226 = vmul.f32 %v1224, %v1213
      %v1227 = vmul.f32 %v1220, %v1212
      %v1228 = vmul.f32 %v1224, %v1214
      %v1229 = vadd.f32 %v1199, %v1225
      %v1230 = vadd.f32 %v1200, %v1226
      %v1231 = vadd.f32 %v1201, %v1227
      %v1232 = vadd.f32 %v1202, %v1228
      %1233 = vrot.lane.b32.xlu0 %v557, 113
      %v1234 = vpop.permute.xlu0 %1233
      %1235 = vrot.lane.b32.xlu0 %v561, 113
      %v1236 = vpop.permute.xlu0 %1235
      %1237 = vrot.lane.b32.xlu0 %v559, 113
      %v1238 = vpop.permute.xlu0 %1237
      %1239 = vrot.lane.b32.xlu0 %v563, 113
      %v1240 = vpop.permute.xlu0 %1239
      %v1241 = vsel %vm847, %v1234, %v1238
      %v1242 = vsel %vm847, %v1236, %v1240
      %v1243 = vsel %vm847, %v1238, %v1234
      %v1244 = vsel %vm847, %v1240, %v1236
      %v1245 = vmul.f32 %v1032, %v876
      %v1246 = vmul.f32 %v1034, %v880
      %v1247 = vlaneseq
      %v1248 = vshrl.u32 %v1247, 7
      %v1249 = vsub.s32 0, %v1248
      %v1250 = vrot.slane %v1245, %v1249
      %v1251 = vlaneseq
      %v1252 = vshrl.u32 %v1251, 7
      %v1253 = vsub.s32 0, %v1252
      %v1254 = vrot.slane %v1246, %v1253
      %v1255 = vmul.f32 %v1250, %v1241
      %v1256 = vmul.f32 %v1254, %v1243
      %v1257 = vmul.f32 %v1250, %v1242
      %v1258 = vmul.f32 %v1254, %v1244
      %v1259 = vadd.f32 %v1229, %v1255
      %v1260 = vadd.f32 %v1230, %v1256
      %v1261 = vadd.f32 %v1231, %v1257
      %v1262 = vadd.f32 %v1232, %v1258
      %1263 = vrot.lane.b32.xlu0 %v557, 112
      %v1264 = vpop.permute.xlu0 %1263
      %1265 = vrot.lane.b32.xlu0 %v561, 112
      %v1266 = vpop.permute.xlu0 %1265
      %1267 = vrot.lane.b32.xlu0 %v559, 112
      %v1268 = vpop.permute.xlu0 %1267
      %1269 = vrot.lane.b32.xlu0 %v563, 112
      %v1270 = vpop.permute.xlu0 %1269
      %v1271 = vsel %vm893, %v1264, %v1268
      %v1272 = vsel %vm893, %v1266, %v1270
      %v1273 = vsel %vm893, %v1268, %v1264
      %v1274 = vsel %vm893, %v1270, %v1266
      %v1275 = vmul.f32 %v1038, %v922
      %v1276 = vmul.f32 %v1040, %v926
      %v1277 = vlaneseq
      %v1278 = vshrl.u32 %v1277, 7
      %v1279 = vsub.s32 0, %v1278
      %v1280 = vrot.slane %v1275, %v1279
      %v1281 = vlaneseq
      %v1282 = vshrl.u32 %v1281, 7
      %v1283 = vsub.s32 0, %v1282
      %v1284 = vrot.slane %v1276, %v1283
      %v1285 = vmul.f32 %v1280, %v1271
      %v1286 = vmul.f32 %v1284, %v1273
      %v1287 = vmul.f32 %v1280, %v1272
      %v1288 = vmul.f32 %v1284, %v1274
      %v1289 = vadd.f32 %v1259, %v1285
      %v1290 = vadd.f32 %v1260, %v1286
      %v1291 = vadd.f32 %v1261, %v1287
      %v1292 = vadd.f32 %v1262, %v1288
      %1293 = vrot.lane.b32.xlu0 %v557, 111
      %v1294 = vpop.permute.xlu0 %1293
      %1295 = vrot.lane.b32.xlu0 %v561, 111
      %v1296 = vpop.permute.xlu0 %1295
      %1297 = vrot.lane.b32.xlu0 %v559, 111
      %v1298 = vpop.permute.xlu0 %1297
      %1299 = vrot.lane.b32.xlu0 %v563, 111
      %v1300 = vpop.permute.xlu0 %1299
      %v1301 = vsel %vm939, %v1294, %v1298
      %v1302 = vsel %vm939, %v1296, %v1300
      %v1303 = vsel %vm939, %v1298, %v1294
      %v1304 = vsel %vm939, %v1300, %v1296
      %v1305 = vmul.f32 %v1044, %v968
      %v1306 = vmul.f32 %v1046, %v972
      %v1307 = vlaneseq
      %v1308 = vshrl.u32 %v1307, 7
      %v1309 = vsub.s32 0, %v1308
      %v1310 = vrot.slane %v1305, %v1309
      %v1311 = vlaneseq
      %v1312 = vshrl.u32 %v1311, 7
      %v1313 = vsub.s32 0, %v1312
      %v1314 = vrot.slane %v1306, %v1313
      %v1315 = vmul.f32 %v1310, %v1301
      %v1316 = vmul.f32 %v1314, %v1303
      %v1317 = vmul.f32 %v1310, %v1302
      %v1318 = vmul.f32 %v1314, %v1304
      %v1319 = vadd.f32 %v1289, %v1315
      %v1320 = vadd.f32 %v1290, %v1316
      %v1321 = vadd.f32 %v1291, %v1317
      %v1322 = vadd.f32 %v1292, %v1318
      %v1323 = vlaneseq
      %v1324 = vshrl.u32 %v1323, 7
      %v1325 = vsub.s32 0, %v1324
      %v1326 = vrot.slane %v1063, %v1325
      %v1327 = vlaneseq
      %v1328 = vshrl.u32 %v1327, 7
      %v1329 = vsub.s32 0, %v1328
      %v1330 = vrot.slane %v1064, %v1329
      %v1331 = vmul.f32 %v1319, %v1326
      %v1332 = vmul.f32 %v1320, %v1330
      %v1333 = vmul.f32 %v1321, %v1326
      %v1334 = vmul.f32 %v1322, %v1330
      %v1335 = vld [vmem:[%s4] sm:$0xff]
      %v1336 = vld [vmem:[%s4 + $0x8] sm:$0xff]
      %v1337 = vld [vmem:[%s4 + $0x10] sm:$0xff]
      %v1338 = vld [vmem:[%s4 + $0x18] sm:$0xff]
      %1339 = vrot.lane.b32.xlu0 %v547, 17
      %v1340 = vpop.permute.xlu0 %1339
      %1341 = vrot.lane.b32.xlu0 %v551, 17
      %v1342 = vpop.permute.xlu0 %1341
      %1343 = vrot.lane.b32.xlu0 %v549, 17
      %v1344 = vpop.permute.xlu0 %1343
      %1345 = vrot.lane.b32.xlu0 %v553, 17
      %v1346 = vpop.permute.xlu0 %1345
      %v1347 = vsel %vm585, %v1340, %v1344
      %v1348 = vsel %vm585, %v1342, %v1346
      %v1349 = vsel %vm585, %v1344, %v1340
      %v1350 = vsel %vm585, %v1346, %v1342
      %v1351 = vmul.f32 %v527, %v1349
      %v1352 = vmul.f32 %v529, %v1347
      %v1353 = vmul.f32 %v531, %v1350
      %v1354 = vmul.f32 %v533, %v1348
      %v1355 = vadd.f32 %v1351, %v1353
      %v1356 = vrot.slane %v1355, 4
      %v1357 = vadd.f32 %v1355, %v1356
      %v1358 = vrot.slane %v1357, 2
      %v1359 = vadd.f32 %v1357, %v1358
      %v1360 = vrot.slane %v1359, 1
      %v1361 = vadd.f32 %v1359, %v1360
      %v1362 = vadd.f32 %v1352, %v1354
      %v1363 = vrot.slane %v1362, 4
      %v1364 = vadd.f32 %v1362, %v1363
      %v1365 = vrot.slane %v1364, 2
      %v1366 = vadd.f32 %v1364, %v1365
      %v1367 = vrot.slane %v1366, 1
      %v1368 = vadd.f32 %v1366, %v1367
      %v1369 = vmul.f32 %v1361, %v613
      %v1370 = vmul.f32 %v1368, %v617
      %1371 = vrot.lane.b32.xlu0 %v547, 16
      %v1372 = vpop.permute.xlu0 %1371
      %1373 = vrot.lane.b32.xlu0 %v551, 16
      %v1374 = vpop.permute.xlu0 %1373
      %1375 = vrot.lane.b32.xlu0 %v549, 16
      %v1376 = vpop.permute.xlu0 %1375
      %1377 = vrot.lane.b32.xlu0 %v553, 16
      %v1378 = vpop.permute.xlu0 %1377
      %v1379 = vsel %vm630, %v1372, %v1376
      %v1380 = vsel %vm630, %v1374, %v1378
      %v1381 = vsel %vm630, %v1376, %v1372
      %v1382 = vsel %vm630, %v1378, %v1374
      %v1383 = vmul.f32 %v527, %v1381
      %v1384 = vmul.f32 %v529, %v1379
      %v1385 = vmul.f32 %v531, %v1382
      %v1386 = vmul.f32 %v533, %v1380
      %v1387 = vadd.f32 %v1383, %v1385
      %v1388 = vrot.slane %v1387, 4
      %v1389 = vadd.f32 %v1387, %v1388
      %v1390 = vrot.slane %v1389, 2
      %v1391 = vadd.f32 %v1389, %v1390
      %v1392 = vrot.slane %v1391, 1
      %v1393 = vadd.f32 %v1391, %v1392
      %v1394 = vadd.f32 %v1384, %v1386
      %v1395 = vrot.slane %v1394, 4
      %v1396 = vadd.f32 %v1394, %v1395
      %v1397 = vrot.slane %v1396, 2
      %v1398 = vadd.f32 %v1396, %v1397
      %v1399 = vrot.slane %v1398, 1
      %v1400 = vadd.f32 %v1398, %v1399
      %v1401 = vmul.f32 %v1393, %v659
      %v1402 = vmul.f32 %v1400, %v663
      %1403 = vrot.lane.b32.xlu0 %v547, 15
      %v1404 = vpop.permute.xlu0 %1403
      %1405 = vrot.lane.b32.xlu0 %v551, 15
      %v1406 = vpop.permute.xlu0 %1405
      %1407 = vrot.lane.b32.xlu0 %v549, 15
      %v1408 = vpop.permute.xlu0 %1407
      %1409 = vrot.lane.b32.xlu0 %v553, 15
      %v1410 = vpop.permute.xlu0 %1409
      %v1411 = vsel %vm676, %v1404, %v1408
      %v1412 = vsel %vm676, %v1406, %v1410
      %v1413 = vsel %vm676, %v1408, %v1404
      %v1414 = vsel %vm676, %v1410, %v1406
      %v1415 = vmul.f32 %v527, %v1413
      %v1416 = vmul.f32 %v529, %v1411
      %v1417 = vmul.f32 %v531, %v1414
      %v1418 = vmul.f32 %v533, %v1412
      %v1419 = vadd.f32 %v1415, %v1417
      %v1420 = vrot.slane %v1419, 4
      %v1421 = vadd.f32 %v1419, %v1420
      %v1422 = vrot.slane %v1421, 2
      %v1423 = vadd.f32 %v1421, %v1422
      %v1424 = vrot.slane %v1423, 1
      %v1425 = vadd.f32 %v1423, %v1424
      %v1426 = vadd.f32 %v1416, %v1418
      %v1427 = vrot.slane %v1426, 4
      %v1428 = vadd.f32 %v1426, %v1427
      %v1429 = vrot.slane %v1428, 2
      %v1430 = vadd.f32 %v1428, %v1429
      %v1431 = vrot.slane %v1430, 1
      %v1432 = vadd.f32 %v1430, %v1431
      %v1433 = vmul.f32 %v1425, %v705
      %v1434 = vmul.f32 %v1432, %v709
      %1435 = vrot.lane.b32.xlu0 %v547, 1
      %v1436 = vpop.permute.xlu0 %1435
      %1437 = vrot.lane.b32.xlu0 %v551, 1
      %v1438 = vpop.permute.xlu0 %1437
      %1439 = vrot.lane.b32.xlu0 %v549, 1
      %v1440 = vpop.permute.xlu0 %1439
      %1441 = vrot.lane.b32.xlu0 %v553, 1
      %v1442 = vpop.permute.xlu0 %1441
      %v1443 = vsel %vm722, %v1436, %v1440
      %v1444 = vsel %vm722, %v1438, %v1442
      %v1445 = vsel %vm722, %v1440, %v1436
      %v1446 = vsel %vm722, %v1442, %v1438
      %v1447 = vmul.f32 %v527, %v1445
      %v1448 = vmul.f32 %v529, %v1443
      %v1449 = vmul.f32 %v531, %v1446
      %v1450 = vmul.f32 %v533, %v1444
      %v1451 = vadd.f32 %v1447, %v1449
      %v1452 = vrot.slane %v1451, 4
      %v1453 = vadd.f32 %v1451, %v1452
      %v1454 = vrot.slane %v1453, 2
      %v1455 = vadd.f32 %v1453, %v1454
      %v1456 = vrot.slane %v1455, 1
      %v1457 = vadd.f32 %v1455, %v1456
      %v1458 = vadd.f32 %v1448, %v1450
      %v1459 = vrot.slane %v1458, 4
      %v1460 = vadd.f32 %v1458, %v1459
      %v1461 = vrot.slane %v1460, 2
      %v1462 = vadd.f32 %v1460, %v1461
      %v1463 = vrot.slane %v1462, 1
      %v1464 = vadd.f32 %v1462, %v1463
      %v1465 = vmul.f32 %v1457, %v751
      %v1466 = vmul.f32 %v1464, %v755
      %v1467 = vmul.f32 %v527, %v547
      %v1468 = vmul.f32 %v529, %v549
      %v1469 = vmul.f32 %v531, %v551
      %v1470 = vmul.f32 %v533, %v553
      %v1471 = vadd.f32 %v1467, %v1469
      %v1472 = vrot.slane %v1471, 4
      %v1473 = vadd.f32 %v1471, %v1472
      %v1474 = vrot.slane %v1473, 2
      %v1475 = vadd.f32 %v1473, %v1474
      %v1476 = vrot.slane %v1475, 1
      %v1477 = vadd.f32 %v1475, %v1476
      %v1478 = vadd.f32 %v1468, %v1470
      %v1479 = vrot.slane %v1478, 4
      %v1480 = vadd.f32 %v1478, %v1479
      %v1481 = vrot.slane %v1480, 2
      %v1482 = vadd.f32 %v1480, %v1481
      %v1483 = vrot.slane %v1482, 1
      %v1484 = vadd.f32 %v1482, %v1483
      %v1485 = vmul.f32 %v1477, %v784
      %v1486 = vmul.f32 %v1484, %v788
      %1487 = vrot.lane.b32.xlu0 %v547, 127
      %v1488 = vpop.permute.xlu0 %1487
      %1489 = vrot.lane.b32.xlu0 %v551, 127
      %v1490 = vpop.permute.xlu0 %1489
      %1491 = vrot.lane.b32.xlu0 %v549, 127
      %v1492 = vpop.permute.xlu0 %1491
      %1493 = vrot.lane.b32.xlu0 %v553, 127
      %v1494 = vpop.permute.xlu0 %1493
      %v1495 = vsel %vm801, %v1488, %v1492
      %v1496 = vsel %vm801, %v1490, %v1494
      %v1497 = vsel %vm801, %v1492, %v1488
      %v1498 = vsel %vm801, %v1494, %v1490
      %v1499 = vmul.f32 %v527, %v1495
      %v1500 = vmul.f32 %v529, %v1497
      %v1501 = vmul.f32 %v531, %v1496
      %v1502 = vmul.f32 %v533, %v1498
      %v1503 = vadd.f32 %v1499, %v1501
      %v1504 = vrot.slane %v1503, 4
      %v1505 = vadd.f32 %v1503, %v1504
      %v1506 = vrot.slane %v1505, 2
      %v1507 = vadd.f32 %v1505, %v1506
      %v1508 = vrot.slane %v1507, 1
      %v1509 = vadd.f32 %v1507, %v1508
      %v1510 = vadd.f32 %v1500, %v1502
      %v1511 = vrot.slane %v1510, 4
      %v1512 = vadd.f32 %v1510, %v1511
      %v1513 = vrot.slane %v1512, 2
      %v1514 = vadd.f32 %v1512, %v1513
      %v1515 = vrot.slane %v1514, 1
      %v1516 = vadd.f32 %v1514, %v1515
      %v1517 = vmul.f32 %v1509, %v830
      %v1518 = vmul.f32 %v1516, %v834
      %1519 = vrot.lane.b32.xlu0 %v547, 113
      %v1520 = vpop.permute.xlu0 %1519
      %1521 = vrot.lane.b32.xlu0 %v551, 113
      %v1522 = vpop.permute.xlu0 %1521
      %1523 = vrot.lane.b32.xlu0 %v549, 113
      %v1524 = vpop.permute.xlu0 %1523
      %1525 = vrot.lane.b32.xlu0 %v553, 113
      %v1526 = vpop.permute.xlu0 %1525
      %v1527 = vsel %vm847, %v1520, %v1524
      %v1528 = vsel %vm847, %v1522, %v1526
      %v1529 = vsel %vm847, %v1524, %v1520
      %v1530 = vsel %vm847, %v1526, %v1522
      %v1531 = vmul.f32 %v527, %v1527
      %v1532 = vmul.f32 %v529, %v1529
      %v1533 = vmul.f32 %v531, %v1528
      %v1534 = vmul.f32 %v533, %v1530
      %v1535 = vadd.f32 %v1531, %v1533
      %v1536 = vrot.slane %v1535, 4
      %v1537 = vadd.f32 %v1535, %v1536
      %v1538 = vrot.slane %v1537, 2
      %v1539 = vadd.f32 %v1537, %v1538
      %v1540 = vrot.slane %v1539, 1
      %v1541 = vadd.f32 %v1539, %v1540
      %v1542 = vadd.f32 %v1532, %v1534
      %v1543 = vrot.slane %v1542, 4
      %v1544 = vadd.f32 %v1542, %v1543
      %v1545 = vrot.slane %v1544, 2
      %v1546 = vadd.f32 %v1544, %v1545
      %v1547 = vrot.slane %v1546, 1
      %v1548 = vadd.f32 %v1546, %v1547
      %v1549 = vmul.f32 %v1541, %v876
      %v1550 = vmul.f32 %v1548, %v880
      %1551 = vrot.lane.b32.xlu0 %v547, 112
      %v1552 = vpop.permute.xlu0 %1551
      %1553 = vrot.lane.b32.xlu0 %v551, 112
      %v1554 = vpop.permute.xlu0 %1553
      %1555 = vrot.lane.b32.xlu0 %v549, 112
      %v1556 = vpop.permute.xlu0 %1555
      %1557 = vrot.lane.b32.xlu0 %v553, 112
      %v1558 = vpop.permute.xlu0 %1557
      %v1559 = vsel %vm893, %v1552, %v1556
      %v1560 = vsel %vm893, %v1554, %v1558
      %v1561 = vsel %vm893, %v1556, %v1552
      %v1562 = vsel %vm893, %v1558, %v1554
      %v1563 = vmul.f32 %v527, %v1559
      %v1564 = vmul.f32 %v529, %v1561
      %v1565 = vmul.f32 %v531, %v1560
      %v1566 = vmul.f32 %v533, %v1562
      %v1567 = vadd.f32 %v1563, %v1565
      %v1568 = vrot.slane %v1567, 4
      %v1569 = vadd.f32 %v1567, %v1568
      %v1570 = vrot.slane %v1569, 2
      %v1571 = vadd.f32 %v1569, %v1570
      %v1572 = vrot.slane %v1571, 1
      %v1573 = vadd.f32 %v1571, %v1572
      %v1574 = vadd.f32 %v1564, %v1566
      %v1575 = vrot.slane %v1574, 4
      %v1576 = vadd.f32 %v1574, %v1575
      %v1577 = vrot.slane %v1576, 2
      %v1578 = vadd.f32 %v1576, %v1577
      %v1579 = vrot.slane %v1578, 1
      %v1580 = vadd.f32 %v1578, %v1579
      %v1581 = vmul.f32 %v1573, %v922
      %v1582 = vmul.f32 %v1580, %v926
      %1583 = vrot.lane.b32.xlu0 %v547, 111
      %v1584 = vpop.permute.xlu0 %1583
      %1585 = vrot.lane.b32.xlu0 %v551, 111
      %v1586 = vpop.permute.xlu0 %1585
      %1587 = vrot.lane.b32.xlu0 %v549, 111
      %v1588 = vpop.permute.xlu0 %1587
      %1589 = vrot.lane.b32.xlu0 %v553, 111
      %v1590 = vpop.permute.xlu0 %1589
      %v1591 = vsel %vm939, %v1584, %v1588
      %v1592 = vsel %vm939, %v1586, %v1590
      %v1593 = vsel %vm939, %v1588, %v1584
      %v1594 = vsel %vm939, %v1590, %v1586
      %v1595 = vmul.f32 %v527, %v1591
      %v1596 = vmul.f32 %v529, %v1593
      %v1597 = vmul.f32 %v531, %v1592
      %v1598 = vmul.f32 %v533, %v1594
      %v1599 = vadd.f32 %v1595, %v1597
      %v1600 = vrot.slane %v1599, 4
      %v1601 = vadd.f32 %v1599, %v1600
      %v1602 = vrot.slane %v1601, 2
      %v1603 = vadd.f32 %v1601, %v1602
      %v1604 = vrot.slane %v1603, 1
      %v1605 = vadd.f32 %v1603, %v1604
      %v1606 = vadd.f32 %v1596, %v1598
      %v1607 = vrot.slane %v1606, 4
      %v1608 = vadd.f32 %v1606, %v1607
      %v1609 = vrot.slane %v1608, 2
      %v1610 = vadd.f32 %v1608, %v1609
      %v1611 = vrot.slane %v1610, 1
      %v1612 = vadd.f32 %v1610, %v1611
      %v1613 = vmul.f32 %v1605, %v968
      %v1614 = vmul.f32 %v1612, %v972
      %v1615 = vmax.f32 %v1369, %v1401
      %v1616 = vmax.f32 %v1370, %v1402
      %v1617 = vmax.f32 %v1615, %v1433
      %v1618 = vmax.f32 %v1616, %v1434
      %v1619 = vmax.f32 %v1617, %v1465
      %v1620 = vmax.f32 %v1618, %v1466
      %v1621 = vmax.f32 %v1619, %v1485
      %v1622 = vmax.f32 %v1620, %v1486
      %v1623 = vmax.f32 %v1621, %v1517
      %v1624 = vmax.f32 %v1622, %v1518
      %v1625 = vmax.f32 %v1623, %v1549
      %v1626 = vmax.f32 %v1624, %v1550
      %v1627 = vmax.f32 %v1625, %v1581
      %v1628 = vmax.f32 %v1626, %v1582
      %v1629 = vmax.f32 %v1627, %v1613
      %v1630 = vmax.f32 %v1628, %v1614
      %v1631 = vsub.f32 %v1369, %v1629
      %v1632 = vsub.f32 %v1370, %v1630
      %v1633 = vmul.f32 %v1631, 1.442695
      %v1634 = vpow.pop %v1633
      %v1635 = vmul.f32 %v1632, 1.442695
      %v1636 = vpow.pop %v1635
      %v1637 = vsub.f32 %v1401, %v1629
      %v1638 = vsub.f32 %v1402, %v1630
      %v1639 = vmul.f32 %v1637, 1.442695
      %v1640 = vpow.pop %v1639
      %v1641 = vmul.f32 %v1638, 1.442695
      %v1642 = vpow.pop %v1641
      %v1643 = vsub.f32 %v1433, %v1629
      %v1644 = vsub.f32 %v1434, %v1630
      %v1645 = vmul.f32 %v1643, 1.442695
      %v1646 = vpow.pop %v1645
      %v1647 = vmul.f32 %v1644, 1.442695
      %v1648 = vpow.pop %v1647
      %v1649 = vsub.f32 %v1465, %v1629
      %v1650 = vsub.f32 %v1466, %v1630
      %v1651 = vmul.f32 %v1649, 1.442695
      %v1652 = vpow.pop %v1651
      %v1653 = vmul.f32 %v1650, 1.442695
      %v1654 = vpow.pop %v1653
      %v1655 = vsub.f32 %v1485, %v1629
      %v1656 = vsub.f32 %v1486, %v1630
      %v1657 = vmul.f32 %v1655, 1.442695
      %v1658 = vpow.pop %v1657
      %v1659 = vmul.f32 %v1656, 1.442695
      %v1660 = vpow.pop %v1659
      %v1661 = vsub.f32 %v1517, %v1629
      %v1662 = vsub.f32 %v1518, %v1630
      %v1663 = vmul.f32 %v1661, 1.442695
      %v1664 = vpow.pop %v1663
      %v1665 = vmul.f32 %v1662, 1.442695
      %v1666 = vpow.pop %v1665
      %v1667 = vsub.f32 %v1549, %v1629
      %v1668 = vsub.f32 %v1550, %v1630
      %v1669 = vmul.f32 %v1667, 1.442695
      %v1670 = vpow.pop %v1669
      %v1671 = vmul.f32 %v1668, 1.442695
      %v1672 = vpow.pop %v1671
      %v1673 = vsub.f32 %v1581, %v1629
      %v1674 = vsub.f32 %v1582, %v1630
      %v1675 = vmul.f32 %v1673, 1.442695
      %v1676 = vpow.pop %v1675
      %v1677 = vmul.f32 %v1674, 1.442695
      %v1678 = vpow.pop %v1677
      %v1679 = vsub.f32 %v1613, %v1629
      %v1680 = vsub.f32 %v1614, %v1630
      %v1681 = vmul.f32 %v1679, 1.442695
      %v1682 = vpow.pop %v1681
      %v1683 = vmul.f32 %v1680, 1.442695
      %v1684 = vpow.pop %v1683
      %v1685 = vadd.f32 %v1634, %v1640
      %v1686 = vadd.f32 %v1636, %v1642
      %v1687 = vadd.f32 %v1685, %v1646
      %v1688 = vadd.f32 %v1686, %v1648
      %v1689 = vadd.f32 %v1687, %v1652
      %v1690 = vadd.f32 %v1688, %v1654
      %v1691 = vadd.f32 %v1689, %v1658
      %v1692 = vadd.f32 %v1690, %v1660
      %v1693 = vadd.f32 %v1691, %v1664
      %v1694 = vadd.f32 %v1692, %v1666
      %v1695 = vadd.f32 %v1693, %v1670
      %v1696 = vadd.f32 %v1694, %v1672
      %v1697 = vadd.f32 %v1695, %v1676
      %v1698 = vadd.f32 %v1696, %v1678
      %v1699 = vadd.f32 %v1697, %v1682
      %v1700 = vadd.f32 %v1698, %v1684
      %v1701 = vrcp.pop %v1699
      %v1702 = vrcp.pop %v1700
      %1703 = vrot.lane.b32.xlu0 %v567, 17
      %v1704 = vpop.permute.xlu0 %1703
      %1705 = vrot.lane.b32.xlu0 %v571, 17
      %v1706 = vpop.permute.xlu0 %1705
      %1707 = vrot.lane.b32.xlu0 %v569, 17
      %v1708 = vpop.permute.xlu0 %1707
      %1709 = vrot.lane.b32.xlu0 %v573, 17
      %v1710 = vpop.permute.xlu0 %1709
      %v1711 = vsel %vm585, %v1704, %v1708
      %v1712 = vsel %vm585, %v1706, %v1710
      %v1713 = vsel %vm585, %v1708, %v1704
      %v1714 = vsel %vm585, %v1710, %v1706
      %v1715 = vmul.f32 %v1634, %v613
      %v1716 = vmul.f32 %v1636, %v617
      %v1717 = vlaneseq
      %v1718 = vshrl.u32 %v1717, 7
      %v1719 = vsub.s32 0, %v1718
      %v1720 = vrot.slane %v1715, %v1719
      %v1721 = vlaneseq
      %v1722 = vshrl.u32 %v1721, 7
      %v1723 = vsub.s32 0, %v1722
      %v1724 = vrot.slane %v1716, %v1723
      %v1725 = vmul.f32 %v1720, %v1713
      %v1726 = vmul.f32 %v1724, %v1711
      %v1727 = vmul.f32 %v1720, %v1714
      %v1728 = vmul.f32 %v1724, %v1712
      %v1729 = vadd.f32 %v1725, 0.0
      %v1730 = vadd.f32 %v1726, 0.0
      %v1731 = vadd.f32 %v1727, 0.0
      %v1732 = vadd.f32 %v1728, 0.0
      %1733 = vrot.lane.b32.xlu0 %v567, 16
      %v1734 = vpop.permute.xlu0 %1733
      %1735 = vrot.lane.b32.xlu0 %v571, 16
      %v1736 = vpop.permute.xlu0 %1735
      %1737 = vrot.lane.b32.xlu0 %v569, 16
      %v1738 = vpop.permute.xlu0 %1737
      %1739 = vrot.lane.b32.xlu0 %v573, 16
      %v1740 = vpop.permute.xlu0 %1739
      %v1741 = vsel %vm630, %v1734, %v1738
      %v1742 = vsel %vm630, %v1736, %v1740
      %v1743 = vsel %vm630, %v1738, %v1734
      %v1744 = vsel %vm630, %v1740, %v1736
      %v1745 = vmul.f32 %v1640, %v659
      %v1746 = vmul.f32 %v1642, %v663
      %v1747 = vlaneseq
      %v1748 = vshrl.u32 %v1747, 7
      %v1749 = vsub.s32 0, %v1748
      %v1750 = vrot.slane %v1745, %v1749
      %v1751 = vlaneseq
      %v1752 = vshrl.u32 %v1751, 7
      %v1753 = vsub.s32 0, %v1752
      %v1754 = vrot.slane %v1746, %v1753
      %v1755 = vmul.f32 %v1750, %v1743
      %v1756 = vmul.f32 %v1754, %v1741
      %v1757 = vmul.f32 %v1750, %v1744
      %v1758 = vmul.f32 %v1754, %v1742
      %v1759 = vadd.f32 %v1729, %v1755
      %v1760 = vadd.f32 %v1730, %v1756
      %v1761 = vadd.f32 %v1731, %v1757
      %v1762 = vadd.f32 %v1732, %v1758
      %1763 = vrot.lane.b32.xlu0 %v567, 15
      %v1764 = vpop.permute.xlu0 %1763
      %1765 = vrot.lane.b32.xlu0 %v571, 15
      %v1766 = vpop.permute.xlu0 %1765
      %1767 = vrot.lane.b32.xlu0 %v569, 15
      %v1768 = vpop.permute.xlu0 %1767
      %1769 = vrot.lane.b32.xlu0 %v573, 15
      %v1770 = vpop.permute.xlu0 %1769
      %v1771 = vsel %vm676, %v1764, %v1768
      %v1772 = vsel %vm676, %v1766, %v1770
      %v1773 = vsel %vm676, %v1768, %v1764
      %v1774 = vsel %vm676, %v1770, %v1766
      %v1775 = vmul.f32 %v1646, %v705
      %v1776 = vmul.f32 %v1648, %v709
      %v1777 = vlaneseq
      %v1778 = vshrl.u32 %v1777, 7
      %v1779 = vsub.s32 0, %v1778
      %v1780 = vrot.slane %v1775, %v1779
      %v1781 = vlaneseq
      %v1782 = vshrl.u32 %v1781, 7
      %v1783 = vsub.s32 0, %v1782
      %v1784 = vrot.slane %v1776, %v1783
      %v1785 = vmul.f32 %v1780, %v1773
      %v1786 = vmul.f32 %v1784, %v1771
      %v1787 = vmul.f32 %v1780, %v1774
      %v1788 = vmul.f32 %v1784, %v1772
      %v1789 = vadd.f32 %v1759, %v1785
      %v1790 = vadd.f32 %v1760, %v1786
      %v1791 = vadd.f32 %v1761, %v1787
      %v1792 = vadd.f32 %v1762, %v1788
      %1793 = vrot.lane.b32.xlu0 %v567, 1
      %v1794 = vpop.permute.xlu0 %1793
      %1795 = vrot.lane.b32.xlu0 %v571, 1
      %v1796 = vpop.permute.xlu0 %1795
      %1797 = vrot.lane.b32.xlu0 %v569, 1
      %v1798 = vpop.permute.xlu0 %1797
      %1799 = vrot.lane.b32.xlu0 %v573, 1
      %v1800 = vpop.permute.xlu0 %1799
      %v1801 = vsel %vm722, %v1794, %v1798
      %v1802 = vsel %vm722, %v1796, %v1800
      %v1803 = vsel %vm722, %v1798, %v1794
      %v1804 = vsel %vm722, %v1800, %v1796
      %v1805 = vmul.f32 %v1652, %v751
      %v1806 = vmul.f32 %v1654, %v755
      %v1807 = vlaneseq
      %v1808 = vshrl.u32 %v1807, 7
      %v1809 = vsub.s32 0, %v1808
      %v1810 = vrot.slane %v1805, %v1809
      %v1811 = vlaneseq
      %v1812 = vshrl.u32 %v1811, 7
      %v1813 = vsub.s32 0, %v1812
      %v1814 = vrot.slane %v1806, %v1813
      %v1815 = vmul.f32 %v1810, %v1803
      %v1816 = vmul.f32 %v1814, %v1801
      %v1817 = vmul.f32 %v1810, %v1804
      %v1818 = vmul.f32 %v1814, %v1802
      %v1819 = vadd.f32 %v1789, %v1815
      %v1820 = vadd.f32 %v1790, %v1816
      %v1821 = vadd.f32 %v1791, %v1817
      %v1822 = vadd.f32 %v1792, %v1818
      %v1823 = vmul.f32 %v1658, %v784
      %v1824 = vmul.f32 %v1660, %v788
      %v1825 = vlaneseq
      %v1826 = vshrl.u32 %v1825, 7
      %v1827 = vsub.s32 0, %v1826
      %v1828 = vrot.slane %v1823, %v1827
      %v1829 = vlaneseq
      %v1830 = vshrl.u32 %v1829, 7
      %v1831 = vsub.s32 0, %v1830
      %v1832 = vrot.slane %v1824, %v1831
      %v1833 = vmul.f32 %v1828, %v567
      %v1834 = vmul.f32 %v1832, %v569
      %v1835 = vmul.f32 %v1828, %v571
      %v1836 = vmul.f32 %v1832, %v573
      %v1837 = vadd.f32 %v1819, %v1833
      %v1838 = vadd.f32 %v1820, %v1834
      %v1839 = vadd.f32 %v1821, %v1835
      %v1840 = vadd.f32 %v1822, %v1836
      %1841 = vrot.lane.b32.xlu0 %v567, 127
      %v1842 = vpop.permute.xlu0 %1841
      %1843 = vrot.lane.b32.xlu0 %v571, 127
      %v1844 = vpop.permute.xlu0 %1843
      %1845 = vrot.lane.b32.xlu0 %v569, 127
      %v1846 = vpop.permute.xlu0 %1845
      %1847 = vrot.lane.b32.xlu0 %v573, 127
      %v1848 = vpop.permute.xlu0 %1847
      %v1849 = vsel %vm801, %v1842, %v1846
      %v1850 = vsel %vm801, %v1844, %v1848
      %v1851 = vsel %vm801, %v1846, %v1842
      %v1852 = vsel %vm801, %v1848, %v1844
      %v1853 = vmul.f32 %v1664, %v830
      %v1854 = vmul.f32 %v1666, %v834
      %v1855 = vlaneseq
      %v1856 = vshrl.u32 %v1855, 7
      %v1857 = vsub.s32 0, %v1856
      %v1858 = vrot.slane %v1853, %v1857
      %v1859 = vlaneseq
      %v1860 = vshrl.u32 %v1859, 7
      %v1861 = vsub.s32 0, %v1860
      %v1862 = vrot.slane %v1854, %v1861
      %v1863 = vmul.f32 %v1858, %v1849
      %v1864 = vmul.f32 %v1862, %v1851
      %v1865 = vmul.f32 %v1858, %v1850
      %v1866 = vmul.f32 %v1862, %v1852
      %v1867 = vadd.f32 %v1837, %v1863
      %v1868 = vadd.f32 %v1838, %v1864
      %v1869 = vadd.f32 %v1839, %v1865
      %v1870 = vadd.f32 %v1840, %v1866
      %1871 = vrot.lane.b32.xlu0 %v567, 113
      %v1872 = vpop.permute.xlu0 %1871
      %1873 = vrot.lane.b32.xlu0 %v571, 113
      %v1874 = vpop.permute.xlu0 %1873
      %1875 = vrot.lane.b32.xlu0 %v569, 113
      %v1876 = vpop.permute.xlu0 %1875
      %1877 = vrot.lane.b32.xlu0 %v573, 113
      %v1878 = vpop.permute.xlu0 %1877
      %v1879 = vsel %vm847, %v1872, %v1876
      %v1880 = vsel %vm847, %v1874, %v1878
      %v1881 = vsel %vm847, %v1876, %v1872
      %v1882 = vsel %vm847, %v1878, %v1874
      %v1883 = vmul.f32 %v1670, %v876
      %v1884 = vmul.f32 %v1672, %v880
      %v1885 = vlaneseq
      %v1886 = vshrl.u32 %v1885, 7
      %v1887 = vsub.s32 0, %v1886
      %v1888 = vrot.slane %v1883, %v1887
      %v1889 = vlaneseq
      %v1890 = vshrl.u32 %v1889, 7
      %v1891 = vsub.s32 0, %v1890
      %v1892 = vrot.slane %v1884, %v1891
      %v1893 = vmul.f32 %v1888, %v1879
      %v1894 = vmul.f32 %v1892, %v1881
      %v1895 = vmul.f32 %v1888, %v1880
      %v1896 = vmul.f32 %v1892, %v1882
      %v1897 = vadd.f32 %v1867, %v1893
      %v1898 = vadd.f32 %v1868, %v1894
      %v1899 = vadd.f32 %v1869, %v1895
      %v1900 = vadd.f32 %v1870, %v1896
      %1901 = vrot.lane.b32.xlu0 %v567, 112
      %v1902 = vpop.permute.xlu0 %1901
      %1903 = vrot.lane.b32.xlu0 %v571, 112
      %v1904 = vpop.permute.xlu0 %1903
      %1905 = vrot.lane.b32.xlu0 %v569, 112
      %v1906 = vpop.permute.xlu0 %1905
      %1907 = vrot.lane.b32.xlu0 %v573, 112
      %v1908 = vpop.permute.xlu0 %1907
      %v1909 = vsel %vm893, %v1902, %v1906
      %v1910 = vsel %vm893, %v1904, %v1908
      %v1911 = vsel %vm893, %v1906, %v1902
      %v1912 = vsel %vm893, %v1908, %v1904
      %v1913 = vmul.f32 %v1676, %v922
      %v1914 = vmul.f32 %v1678, %v926
      %v1915 = vlaneseq
      %v1916 = vshrl.u32 %v1915, 7
      %v1917 = vsub.s32 0, %v1916
      %v1918 = vrot.slane %v1913, %v1917
      %v1919 = vlaneseq
      %v1920 = vshrl.u32 %v1919, 7
      %v1921 = vsub.s32 0, %v1920
      %v1922 = vrot.slane %v1914, %v1921
      %v1923 = vmul.f32 %v1918, %v1909
      %v1924 = vmul.f32 %v1922, %v1911
      %v1925 = vmul.f32 %v1918, %v1910
      %v1926 = vmul.f32 %v1922, %v1912
      %v1927 = vadd.f32 %v1897, %v1923
      %v1928 = vadd.f32 %v1898, %v1924
      %v1929 = vadd.f32 %v1899, %v1925
      %v1930 = vadd.f32 %v1900, %v1926
      %1931 = vrot.lane.b32.xlu0 %v567, 111
      %v1932 = vpop.permute.xlu0 %1931
      %1933 = vrot.lane.b32.xlu0 %v571, 111
      %v1934 = vpop.permute.xlu0 %1933
      %1935 = vrot.lane.b32.xlu0 %v569, 111
      %v1936 = vpop.permute.xlu0 %1935
      %1937 = vrot.lane.b32.xlu0 %v573, 111
      %v1938 = vpop.permute.xlu0 %1937
      %v1939 = vsel %vm939, %v1932, %v1936
      %v1940 = vsel %vm939, %v1934, %v1938
      %v1941 = vsel %vm939, %v1936, %v1932
      %v1942 = vsel %vm939, %v1938, %v1934
      %v1943 = vmul.f32 %v1682, %v968
      %v1944 = vmul.f32 %v1684, %v972
      %v1945 = vlaneseq
      %v1946 = vshrl.u32 %v1945, 7
      %v1947 = vsub.s32 0, %v1946
      %v1948 = vrot.slane %v1943, %v1947
      %v1949 = vlaneseq
      %v1950 = vshrl.u32 %v1949, 7
      %v1951 = vsub.s32 0, %v1950
      %v1952 = vrot.slane %v1944, %v1951
      %v1953 = vmul.f32 %v1948, %v1939
      %v1954 = vmul.f32 %v1952, %v1941
      %v1955 = vmul.f32 %v1948, %v1940
      %v1956 = vmul.f32 %v1952, %v1942
      %v1957 = vadd.f32 %v1927, %v1953
      %v1958 = vadd.f32 %v1928, %v1954
      %v1959 = vadd.f32 %v1929, %v1955
      %v1960 = vadd.f32 %v1930, %v1956
      %v1961 = vlaneseq
      %v1962 = vshrl.u32 %v1961, 7
      %v1963 = vsub.s32 0, %v1962
      %v1964 = vrot.slane %v1701, %v1963
      %v1965 = vlaneseq
      %v1966 = vshrl.u32 %v1965, 7
      %v1967 = vsub.s32 0, %v1966
      %v1968 = vrot.slane %v1702, %v1967
      %v1969 = vmul.f32 %v1957, %v1964
      %v1970 = vmul.f32 %v1958, %v1968
      %v1971 = vmul.f32 %v1959, %v1964
      %v1972 = vmul.f32 %v1960, %v1968
      %s1973 = scalar_lea.vmem %s4, 32
      %v1974 = vld [vmem:[%s1973] sm:$0xff]
      %v1975 = vld [vmem:[%s1973 + $0x8] sm:$0xff]
      %v1976 = vld [vmem:[%s1973 + $0x10] sm:$0xff]
      %v1977 = vld [vmem:[%s1973 + $0x18] sm:$0xff]
      %vm1978 = vcmask 130048
      %v1980 = vsel %vm1978, %v1974, 0
      %v1983 = vsel %vm1978, %v1975, 0
      %v1986 = vsel %vm1978, %v1976, 0
      %v1989 = vsel %vm1978, %v1977, 0
      %1991 = vmatprep.subr.mxu0 %v1970
      %1992 = vmatpush1.msra.mxu0 %v1969
      %1993 = vmatprep.subr.mxu0 %v1972
      %1994 = vmatpush1.msra.mxu0 %v1971
      %1995 = vmatprep.subr.mxu0 0.0
      %1996 = vmatpush1.msra.mxu0 0.0
      %1997 = vmatprep.subr.mxu0 0.0
      %1998 = vmatpush1.msra.mxu0 0.0
      %1999 = vmatprep.subr.mxu0 0.0
      %2000 = vmatpush1.msra.mxu0 0.0
      %2001 = vmatprep.subr.mxu0 0.0
      %2002 = vmatpush1.msra.mxu0 0.0
      %2003 = vmatprep.subr.mxu0 0.0
      %2004 = vmatpush1.msra.mxu0 0.0
      %2005 = vmatprep.subr.mxu0 0.0
      %2006 = vmatpush1.msra.mxu0 0.0
      %2007 = vmatprep.subr.mxu0 0.0
      %2008 = vmatpush1.msra.mxu0 0.0
      %2009 = vmatprep.subr.mxu0 0.0
      %2010 = vmatpush1.msra.mxu0 0.0
      %2011 = vmatprep.subr.mxu0 0.0
      %2012 = vmatpush1.msra.mxu0 0.0
      %2013 = vmatprep.subr.mxu0 0.0
      %2014 = vmatpush1.msra.mxu0 0.0
      %2015 = vmatprep.subr.mxu0 0.0
      %2016 = vmatpush1.msra.mxu0 0.0
      %2017 = vmatprep.subr.mxu0 0.0
      %2018 = vmatpush1.msra.mxu0 0.0
      %2019 = vmatprep.subr.mxu0 0.0
      %2020 = vmatpush1.msra.mxu0 0.0
      %2021 = vmatprep.subr.mxu0 0.0
      %2022 = vmatpush1.msra.mxu0 0.0
      %2023 = vmatprep.subr.mxu0 0.0
      %2024 = vmatpush1.msra.mxu0 0.0
      %2025 = vmatprep.subr.mxu0 0.0
      %2026 = vmatpush1.msra.mxu0 0.0
      %2027 = vmatprep.subr.mxu0 0.0
      %2028 = vmatpush1.msra.mxu0 0.0
      %2029 = vmatprep.subr.mxu0 0.0
      %2030 = vmatpush1.msra.mxu0 0.0
      %2031 = vmatprep.subr.mxu0 0.0
      %2032 = vmatpush1.msra.mxu0 0.0
      %2033 = vmatprep.subr.mxu0 0.0
      %2034 = vmatpush1.msra.mxu0 0.0
      %2035 = vmatprep.subr.mxu0 0.0
      %2036 = vmatpush1.msra.mxu0 0.0
      %2037 = vmatprep.subr.mxu0 0.0
      %2038 = vmatpush1.msra.mxu0 0.0
      %2039 = vmatprep.subr.mxu0 0.0
      %2040 = vmatpush1.msra.mxu0 0.0
      %2041 = vmatprep.subr.mxu0 0.0
      %2042 = vmatpush1.msra.mxu0 0.0
      %2043 = vmatprep.subr.mxu0 0.0
      %2044 = vmatpush1.msra.mxu0 0.0
      %2045 = vmatprep.subr.mxu0 0.0
      %2046 = vmatpush1.msra.mxu0 0.0
      %2047 = vmatprep.subr.mxu0 0.0
      %2048 = vmatpush1.msra.mxu0 0.0
      %2049 = vmatprep.subr.mxu0 0.0
      %2050 = vmatpush1.msra.mxu0 0.0
      %2051 = vmatprep.subr.mxu0 0.0
      %2052 = vmatpush1.msra.mxu0 0.0
      %2053 = vmatprep.subr.mxu0 0.0
      %2054 = vmatpush1.msra.mxu0 0.0
      %2055 = vmatprep.mubr.f32.mxu0 0.0
      %2056 = vmatmul.mubr.f32.gmra.mrb[0].mxu0 %v1980
      %v2057 = vpop.f32.mrb[0].mxu0
      %v2058 = vadd.f32 0.0, %v2057
      %v2059 = vpop.f32.mrb[0].mxu0
      %v2060 = vadd.f32 0.0, %v2059
      %2061 = vmatprep.mubr.f32.mxu0 0.0
      %2062 = vmatmul.mubr.f32.gmra.mrb[0].mxu0 %v1983
      %v2063 = vpop.f32.mrb[0].mxu0
      %v2064 = vadd.f32 0.0, %v2063
      %v2065 = vpop.f32.mrb[0].mxu0
      %v2066 = vadd.f32 0.0, %v2065
      %2067 = vmatprep.mubr.f32.mxu0 0.0
      %2068 = vmatmul.mubr.f32.gmra.mrb[0].mxu0 %v1986
      %v2069 = vpop.f32.mrb[0].mxu0
      %v2070 = vadd.f32 0.0, %v2069
      %v2071 = vpop.f32.mrb[0].mxu0
      %v2072 = vadd.f32 0.0, %v2071
      %2073 = vmatprep.mubr.f32.mxu0 0.0
      %2074 = vmatmul.mubr.f32.gmra.mrb[0].mxu0 %v1989
      %v2075 = vpop.f32.mrb[0].mxu0
      %v2076 = vadd.f32 0.0, %v2075
      %v2077 = vpop.f32.mrb[0].mxu0
      %v2078 = vadd.f32 0.0, %v2077
      %2079 = vdwg.mxu0
      %v2081 = vsel %vm1978, %v1335, 0
      %v2084 = vsel %vm1978, %v1336, 0
      %v2087 = vsel %vm1978, %v1337, 0
      %v2090 = vsel %vm1978, %v1338, 0
      %2092 = vmatprep.subr.mxu0 %v1332
      %2093 = vmatpush1.msra.mxu0 %v1331
      %2094 = vmatprep.subr.mxu0 %v1334
      %2095 = vmatpush1.msra.mxu0 %v1333
      %2096 = vmatprep.subr.mxu0 0.0
      %2097 = vmatpush1.msra.mxu0 0.0
      %2098 = vmatprep.subr.mxu0 0.0
      %2099 = vmatpush1.msra.mxu0 0.0
      %2100 = vmatprep.subr.mxu0 0.0
      %2101 = vmatpush1.msra.mxu0 0.0
      %2102 = vmatprep.subr.mxu0 0.0
      %2103 = vmatpush1.msra.mxu0 0.0
      %2104 = vmatprep.subr.mxu0 0.0
      %2105 = vmatpush1.msra.mxu0 0.0
      %2106 = vmatprep.subr.mxu0 0.0
      %2107 = vmatpush1.msra.mxu0 0.0
      %2108 = vmatprep.subr.mxu0 0.0
      %2109 = vmatpush1.msra.mxu0 0.0
      %2110 = vmatprep.subr.mxu0 0.0
      %2111 = vmatpush1.msra.mxu0 0.0
      %2112 = vmatprep.subr.mxu0 0.0
      %2113 = vmatpush1.msra.mxu0 0.0
      %2114 = vmatprep.subr.mxu0 0.0
      %2115 = vmatpush1.msra.mxu0 0.0
      %2116 = vmatprep.subr.mxu0 0.0
      %2117 = vmatpush1.msra.mxu0 0.0
      %2118 = vmatprep.subr.mxu0 0.0
      %2119 = vmatpush1.msra.mxu0 0.0
      %2120 = vmatprep.subr.mxu0 0.0
      %2121 = vmatpush1.msra.mxu0 0.0
      %2122 = vmatprep.subr.mxu0 0.0
      %2123 = vmatpush1.msra.mxu0 0.0
      %2124 = vmatprep.subr.mxu0 0.0
      %2125 = vmatpush1.msra.mxu0 0.0
      %2126 = vmatprep.subr.mxu0 0.0
      %2127 = vmatpush1.msra.mxu0 0.0
      %2128 = vmatprep.subr.mxu0 0.0
      %2129 = vmatpush1.msra.mxu0 0.0
      %2130 = vmatprep.subr.mxu0 0.0
      %2131 = vmatpush1.msra.mxu0 0.0
      %2132 = vmatprep.subr.mxu0 0.0
      %2133 = vmatpush1.msra.mxu0 0.0
      %2134 = vmatprep.subr.mxu0 0.0
      %2135 = vmatpush1.msra.mxu0 0.0
      %2136 = vmatprep.subr.mxu0 0.0
      %2137 = vmatpush1.msra.mxu0 0.0
      %2138 = vmatprep.subr.mxu0 0.0
      %2139 = vmatpush1.msra.mxu0 0.0
      %2140 = vmatprep.subr.mxu0 0.0
      %2141 = vmatpush1.msra.mxu0 0.0
      %2142 = vmatprep.subr.mxu0 0.0
      %2143 = vmatpush1.msra.mxu0 0.0
      %2144 = vmatprep.subr.mxu0 0.0
      %2145 = vmatpush1.msra.mxu0 0.0
      %2146 = vmatprep.subr.mxu0 0.0
      %2147 = vmatpush1.msra.mxu0 0.0
      %2148 = vmatprep.subr.mxu0 0.0
      %2149 = vmatpush1.msra.mxu0 0.0
      %2150 = vmatprep.subr.mxu0 0.0
      %2151 = vmatpush1.msra.mxu0 0.0
      %2152 = vmatprep.subr.mxu0 0.0
      %2153 = vmatpush1.msra.mxu0 0.0
      %2154 = vmatprep.subr.mxu0 0.0
      %2155 = vmatpush1.msra.mxu0 0.0
      %2156 = vmatprep.mubr.f32.mxu0 0.0
      %2157 = vmatmul.mubr.f32.gmra.mrb[0].mxu0 %v2081
      %v2158 = vpop.f32.mrb[0].mxu0
      %v2159 = vadd.f32 %v2058, %v2158
      %v2160 = vpop.f32.mrb[0].mxu0
      %v2161 = vadd.f32 %v2060, %v2160
      %2162 = vmatprep.mubr.f32.mxu0 0.0
      %2163 = vmatmul.mubr.f32.gmra.mrb[0].mxu0 %v2084
      %v2164 = vpop.f32.mrb[0].mxu0
      %v2165 = vadd.f32 %v2064, %v2164
      %v2166 = vpop.f32.mrb[0].mxu0
      %v2167 = vadd.f32 %v2066, %v2166
      %2168 = vmatprep.mubr.f32.mxu0 0.0
      %2169 = vmatmul.mubr.f32.gmra.mrb[0].mxu0 %v2087
      %v2170 = vpop.f32.mrb[0].mxu0
      %v2171 = vadd.f32 %v2070, %v2170
      %v2172 = vpop.f32.mrb[0].mxu0
      %v2173 = vadd.f32 %v2072, %v2172
      %2174 = vmatprep.mubr.f32.mxu0 0.0
      %2175 = vmatmul.mubr.f32.gmra.mrb[0].mxu0 %v2090
      %v2176 = vpop.f32.mrb[0].mxu0
      %v2177 = vadd.f32 %v2076, %v2176
      %v2178 = vpop.f32.mrb[0].mxu0
      %v2179 = vadd.f32 %v2078, %v2178
      %2180 = vdwg.mxu0
      %2181 = vxpose.xlu0.b32.start [1/16] %v2159, 128
      %2182 = vxpose.xlu0.b32.cont [2/16] %v2165, 128
      %2183 = vxpose.xlu0.b32.cont [3/16] %v2171, 128
      %2184 = vxpose.xlu0.b32.cont [4/16] %v2177, 128
      %2185 = vxpose.xlu0.b32.cont [5/16] 0.0, 128
      %2186 = vxpose.xlu0.b32.cont [6/16] 0.0, 128
      %2187 = vxpose.xlu0.b32.cont [7/16] 0.0, 128
      %2188 = vxpose.xlu0.b32.cont [8/16] 0.0, 128
      %2189 = vxpose.xlu0.b32.cont [9/16] 0.0, 128
      %2190 = vxpose.xlu0.b32.cont [10/16] 0.0, 128
      %2191 = vxpose.xlu0.b32.cont [11/16] 0.0, 128
      %2192 = vxpose.xlu0.b32.cont [12/16] 0.0, 128
      %2193 = vxpose.xlu0.b32.cont [13/16] 0.0, 128
      %2194 = vxpose.xlu0.b32.cont [14/16] 0.0, 128
      %2195 = vxpose.xlu0.b32.cont [15/16] 0.0, 128
      %2196 = vxpose.xlu0.b32.end [16/16] 0.0, 128
      %v2197 = vpop.trf.xlu0
      %v2198 = vpop.trf.xlu0
      %v2199 = vpop.trf.xlu0
      %v2200 = vpop.trf.xlu0
      %v2201 = vpop.trf.xlu0
      %v2202 = vpop.trf.xlu0
      %v2203 = vpop.trf.xlu0
      %v2204 = vpop.trf.xlu0
      %v2205 = vpop.trf.xlu0
      %v2206 = vpop.trf.xlu0
      %v2207 = vpop.trf.xlu0
      %v2208 = vpop.trf.xlu0
      %v2209 = vpop.trf.xlu0
      %v2210 = vpop.trf.xlu0
      %v2211 = vpop.trf.xlu0
      %v2212 = vpop.trf.xlu0
      %2213 = vxpose.xlu0.b32.start [1/16] %v2161, 128
      %2214 = vxpose.xlu0.b32.cont [2/16] %v2167, 128
      %2215 = vxpose.xlu0.b32.cont [3/16] %v2173, 128
      %2216 = vxpose.xlu0.b32.cont [4/16] %v2179, 128
      %2217 = vxpose.xlu0.b32.cont [5/16] 0.0, 128
      %2218 = vxpose.xlu0.b32.cont [6/16] 0.0, 128
      %2219 = vxpose.xlu0.b32.cont [7/16] 0.0, 128
      %2220 = vxpose.xlu0.b32.cont [8/16] 0.0, 128
      %2221 = vxpose.xlu0.b32.cont [9/16] 0.0, 128
      %2222 = vxpose.xlu0.b32.cont [10/16] 0.0, 128
      %2223 = vxpose.xlu0.b32.cont [11/16] 0.0, 128
      %2224 = vxpose.xlu0.b32.cont [12/16] 0.0, 128
      %2225 = vxpose.xlu0.b32.cont [13/16] 0.0, 128
      %2226 = vxpose.xlu0.b32.cont [14/16] 0.0, 128
      %2227 = vxpose.xlu0.b32.cont [15/16] 0.0, 128
      %2228 = vxpose.xlu0.b32.end [16/16] 0.0, 128
      %v2229 = vpop.trf.xlu0
      %v2230 = vpop.trf.xlu0
      %v2231 = vpop.trf.xlu0
      %v2232 = vpop.trf.xlu0
      %v2233 = vpop.trf.xlu0
      %v2234 = vpop.trf.xlu0
      %v2235 = vpop.trf.xlu0
      %v2236 = vpop.trf.xlu0
      %v2237 = vpop.trf.xlu0
      %v2238 = vpop.trf.xlu0
      %v2239 = vpop.trf.xlu0
      %v2240 = vpop.trf.xlu0
      %v2241 = vpop.trf.xlu0
      %v2242 = vpop.trf.xlu0
      %v2243 = vpop.trf.xlu0
      %v2244 = vpop.trf.xlu0
      %v2245 = vld [vmem:[%s5] sm:$0x1]
      %v2247 = vlaneseq
      %v2248 = vshrl.u32 %v2247, 7
      %v2249 = vsub.s32 0, %v2248
      %v2250 = vrot.slane %v2245, %v2249
      %v2252 = vadd.f32 %v2197, %v2250
      %v2253 = vadd.f32 %v2198, %v2250
      %v2254 = vadd.f32 %v2199, %v2250
      %v2255 = vadd.f32 %v2200, %v2250
      %v2256 = vadd.f32 %v2201, %v2250
      %v2257 = vadd.f32 %v2202, %v2250
      %v2258 = vadd.f32 %v2203, %v2250
      %v2259 = vadd.f32 %v2204, %v2250
      %v2260 = vadd.f32 %v2205, %v2250
      %v2261 = vadd.f32 %v2206, %v2250
      %v2262 = vadd.f32 %v2207, %v2250
      %v2263 = vadd.f32 %v2208, %v2250
      %v2264 = vadd.f32 %v2209, %v2250
      %v2265 = vadd.f32 %v2210, %v2250
      %v2266 = vadd.f32 %v2211, %v2250
      %v2267 = vadd.f32 %v2212, %v2250
      %v2268 = vadd.f32 %v2229, %v2250
      %v2269 = vadd.f32 %v2230, %v2250
      %v2270 = vadd.f32 %v2231, %v2250
      %v2271 = vadd.f32 %v2232, %v2250
      %v2272 = vadd.f32 %v2233, %v2250
      %v2273 = vadd.f32 %v2234, %v2250
      %v2274 = vadd.f32 %v2235, %v2250
      %v2275 = vadd.f32 %v2236, %v2250
      %v2276 = vadd.f32 %v2237, %v2250
      %v2277 = vadd.f32 %v2238, %v2250
      %v2278 = vadd.f32 %v2239, %v2250
      %v2279 = vadd.f32 %v2240, %v2250
      %v2280 = vadd.f32 %v2241, %v2250
      %v2281 = vadd.f32 %v2242, %v2250
      %v2282 = vadd.f32 %v2243, %v2250
      %v2283 = vadd.f32 %v2244, %v2250
      %2284 = vst.msk [vmem:[%s251] sm:$0xff] %vm415, %v2252
      %2285 = vst.msk [vmem:[%s251 + $0x8] sm:$0xff] %vm415, %v2253
      %2286 = vst.msk [vmem:[%s251 + $0x10] sm:$0xff] %vm415, %v2254
      %2287 = vst.msk [vmem:[%s251 + $0x18] sm:$0xff] %vm415, %v2255
      %2288 = vst.msk [vmem:[%s251 + $0x20] sm:$0xff] %vm415, %v2256
      %2289 = vst.msk [vmem:[%s251 + $0x28] sm:$0xff] %vm415, %v2257
      %2290 = vst.msk [vmem:[%s251 + $0x30] sm:$0xff] %vm415, %v2258
      %2291 = vst.msk [vmem:[%s251 + $0x38] sm:$0xff] %vm415, %v2259
      %2292 = vst.msk [vmem:[%s251 + $0x40] sm:$0xff] %vm415, %v2260
      %2293 = vst.msk [vmem:[%s251 + $0x48] sm:$0xff] %vm415, %v2261
      %2294 = vst.msk [vmem:[%s251 + $0x50] sm:$0xff] %vm415, %v2262
      %2295 = vst.msk [vmem:[%s251 + $0x58] sm:$0xff] %vm415, %v2263
      %2296 = vst.msk [vmem:[%s251 + $0x60] sm:$0xff] %vm415, %v2264
      %2297 = vst.msk [vmem:[%s251 + $0x68] sm:$0xff] %vm415, %v2265
      %2298 = vst.msk [vmem:[%s251 + $0x70] sm:$0xff] %vm415, %v2266
      %2299 = vst.msk [vmem:[%s251 + $0x78] sm:$0xff] %vm415, %v2267
      %2300 = vst.msk [vmem:[%s251 + $0x80] sm:$0xff] %vm415, %v2268
      %2301 = vst.msk [vmem:[%s251 + $0x88] sm:$0xff] %vm415, %v2269
      %2302 = vst.msk [vmem:[%s251 + $0x90] sm:$0xff] %vm415, %v2270
      %2303 = vst.msk [vmem:[%s251 + $0x98] sm:$0xff] %vm415, %v2271
      %2304 = vst.msk [vmem:[%s251 + $0xa0] sm:$0xff] %vm415, %v2272
      %2305 = vst.msk [vmem:[%s251 + $0xa8] sm:$0xff] %vm415, %v2273
      %2306 = vst.msk [vmem:[%s251 + $0xb0] sm:$0xff] %vm415, %v2274
      %2307 = vst.msk [vmem:[%s251 + $0xb8] sm:$0xff] %vm415, %v2275
      %2308 = vst.msk [vmem:[%s251 + $0xc0] sm:$0xff] %vm415, %v2276
      %2309 = vst.msk [vmem:[%s251 + $0xc8] sm:$0xff] %vm415, %v2277
      %2310 = vst.msk [vmem:[%s251 + $0xd0] sm:$0xff] %vm415, %v2278
      %2311 = vst.msk [vmem:[%s251 + $0xd8] sm:$0xff] %vm415, %v2279
      %2312 = vst.msk [vmem:[%s251 + $0xe0] sm:$0xff] %vm415, %v2280
      %2313 = vst.msk [vmem:[%s251 + $0xe8] sm:$0xff] %vm415, %v2281
      %2314 = vst.msk [vmem:[%s251 + $0xf0] sm:$0xff] %vm415, %v2282
      %2315 = vst.msk [vmem:[%s251 + $0xf8] sm:$0xff] %vm415, %v2283
      %p2316 = scmp.lt.s32.totalorder %s17, 1
      %s2317 = scalar_select %p2316, %s17, 1
      %s2318 = smul.addr %s2317, 32
      %s2319 = smul.addr %s2318, 8
      %s2320 = scalar_lea.vmem %s6, %s2319
      // Predicated region
      $region45: #{center_attention_forward.1} parent=43 // pred_check
        %p2321 = pneg %p166
      $region46: #{center_attention_forward.1} parent=43 // pred_check_branch
        %2323 = sbr.rel (%p2321) target = $region48
      $region47: #{center_attention_forward.1} parent=43 // pred_region
        _
      $region48: #{center_attention_forward.1} parent=43 // pred_fallthru
        _
    $region44: #{center_attention_forward.1} parent=5 // pred_fallthru
      _
    %p2324 = scmp.le.s32.totalorder 2, %s12
    // Predicated region
    $region49: #{center_attention_forward.1} parent=5 // pred_check
      %p2325 = pneg %p2324
    $region50: #{center_attention_forward.1} parent=5 // pred_check_branch
      %2327 = sbr.rel (%p2325) target = $region52
    $region51: #{center_attention_forward.1} parent=5 // pred_region
      %s2328 = ssub.s32 %s12, 2
      // Predicated region
      $region53: #{center_attention_forward.1} parent=51 // pred_check
        %p2329 = pneg %p172
      $region54: #{center_attention_forward.1} parent=51 // pred_check_branch
        %2331 = sbr.rel (%p2329) target = $region56
      $region55: #{center_attention_forward.1} parent=51 // pred_region
        %p2332 = scmp.lt.s32.totalorder %s18, 1
        %s2333 = scalar_select %p2332, %s18, 1
        %s2334 = smul.addr %s2333, 32
        %s2335 = smul.addr %s2334, 8
        %s2336 = scalar_lea.vmem %s6, %s2335
      $region56: #{center_attention_forward.1} parent=51 // pred_fallthru
        _
    $region52: #{center_attention_forward.1} parent=5 // pred_fallthru
      _
  $region6: #{center_attention_forward.1} parent=0 // loop_footer
    %s16 = sadd.s32 1, %s12
  $region7: #{center_attention_forward.1} parent=0 // loop_footer_branch
    %11 = sbr.rel target = $region3
  $region8: #{center_attention_forward.1} parent=0 // loop_exit
    _

</llo_original>
